<compile_context>
chip_gen: v5e
topology: v5e:2x2
jax: 0.10.0
libtpu: 0.0.40
codegen_flags: <defaults>
</compile_context>

<pallas_src>
import functools

import numpy as np
import jax
import jax.numpy as jnp
from jax import lax
from jax.experimental import pallas as pl
from jax.experimental.pallas import tpu as pltpu

# ---------------------------------------------------------------------------
# Static configuration (small, deterministic stand-in for a fitted encoder)
# ---------------------------------------------------------------------------
# Encoded-feature layout of the TabularEncoder output: (activation, width)
LAYOUT = (("tanh", 1), ("softmax", 3), ("tanh", 1), ("softmax", 3), ("softmax", 4))
N_FEATURES = sum(w for _, w in LAYOUT)          # encoder.n_features() == 12

N_UNITS_EMBEDDING = 32
N_UNITS_COND = 4                                # dataloader_sampler.conditional_dimension()
N_UNITS_HIDDEN = 64                             # decoder_n_units_hidden (scaled down from 250)
NEG_SLOPE = 0.01                                # torch.nn.LeakyReLU default slope

D_IN = N_UNITS_EMBEDDING + N_UNITS_COND         # 36 real input features
D_PAD = 128                                     # lane-padded input slab (last lane = const 1 for bias)
F_PAD = 128                                     # lane-padded output slab


def _leaky_relu(x):
    return jnp.where(x >= 0, x, NEG_SLOPE * x)


# ---------------------------------------------------------------------------
# Pallas kernel: residual-MLP decoder forward with fused output nonlinearities
# ---------------------------------------------------------------------------
def _decoder_kernel(x_ref, w0_ref, w1h_ref, w1x_ref,
                    woh1_ref, woh0_ref, wox_ref, s_ref, out_ref):
    xb = x_ref[...]                                                      # (tb, 128) bf16

    # ---- residual MLP (bf16 MXU operands, f32 accumulation, biases folded) ----
    h0 = _leaky_relu(jnp.dot(xb, w0_ref[...], preferred_element_type=jnp.float32))
    h0b = h0.astype(jnp.bfloat16)
    h1 = _leaky_relu(
        jnp.dot(h0b, w1h_ref[...], preferred_element_type=jnp.float32)
        + jnp.dot(xb, w1x_ref[...], preferred_element_type=jnp.float32))
    h1b = h1.astype(jnp.bfloat16)
    # No lane-concat: three small dots on the (nearly idle) MXU instead.
    y = (jnp.dot(h1b, woh1_ref[...], preferred_element_type=jnp.float32)
         + jnp.dot(h0b, woh0_ref[...], preferred_element_type=jnp.float32)
         + jnp.dot(xb, wox_ref[...], preferred_element_type=jnp.float32))  # (tb, F_PAD) f32

    # ---- static per-lane masks from the activation layout ---------------------
    col = lax.broadcasted_iota(jnp.int32, (1, F_PAD), 1)                 # (1, 128)
    soft_mask = col < 0                                                  # all-false
    tanh_mask = col < 0
    off = 0
    for act, width in LAYOUT:                                            # static -> unrolled
        m = (col >= off) & (col < off + width)
        if act == "softmax":
            soft_mask = soft_mask | m
        else:
            tanh_mask = tanh_mask | m
        off += width

    # ---- fused softmax + tanh: one exp pass, one MXU block-sum, one divide ----
    # A single row-wise max over the softmax lanes keeps exp from overflowing;
    # per-block softmax is shift-invariant, so the result is unchanged.
    neg_inf = jnp.float32(-jnp.inf)
    m_row = jnp.max(jnp.where(soft_mask, y, neg_inf), axis=-1, keepdims=True)
    z = jnp.where(soft_mask, y - m_row,
                  jnp.where(tanh_mask, -2.0 * jnp.abs(y), 0.0))
    e = jnp.exp(z)                                                       # single EUP pass
    # Per-block sums on the MXU: S[i, j] = 1 iff lanes i, j share a softmax block.
    s = jnp.dot(e, s_ref[...], preferred_element_type=jnp.float32)
    d = jnp.where(soft_mask, jnp.maximum(s, 1e-30), 1.0 + e)
    r = 1.0 / d                                                          # exact (shared by both paths)
    sgn = jnp.where(y >= 0.0, 1.0, -1.0)
    tanh_y = sgn * (1.0 - e) * r                                         # tanh(y) = sign(y)*(1-e^(-2|y|))/(1+e^(-2|y|))
    out = jnp.where(soft_mask, e * r, jnp.where(tanh_mask, tanh_y, 0.0))
    out_ref[...] = out.astype(out_ref.dtype)                             # single wide bf16 store


# ---------------------------------------------------------------------------
# Wrapper: grid over the batch, weights resident, lane-dense padded output
# ---------------------------------------------------------------------------
def _build_input_slab(key, b_pad):
    """lanes [0,32): N(0,1) noise; [32,36): one-hot cond; [36,127): 0; 127: 1 (bias)."""
    k_noise, k_cond = jax.random.split(key)
    noise = jax.random.normal(k_noise, (b_pad, N_UNITS_EMBEDDING), jnp.float32)
    # TODO(synk): the real dataloader_sampler draws conditionals from the fitted
    #             data distribution; here they are sampled uniformly.
    cats = jax.random.randint(k_cond, (b_pad,), 0, N_UNITS_COND)
    cond = jax.nn.one_hot(cats, N_UNITS_COND, dtype=jnp.float32)
    x = jnp.zeros((b_pad, D_PAD), jnp.float32)
    x = x.at[:, :N_UNITS_EMBEDDING].set(noise)
    x = x.at[:, N_UNITS_EMBEDDING:D_IN].set(cond)
    x = x.at[:, D_PAD - 1].set(1.0)
    return x.astype(jnp.bfloat16)


@functools.partial(jax.jit, static_argnames=("count", "tb"))
def decoder_forward(key, count, params, tb=2048):
    """Generate `count` decoded rows; returns (count, N_FEATURES) float32.

    tb default 2048 amortizes the ~0.35 us/grid-step overhead; keep tb <= 2048
    on v7x (64 MiB physical VMEM), larger is fine on v5e/v6e (128 MiB).
    """
    h = N_UNITS_HIDDEN
    b_pad = pl.cdiv(count, tb) * tb
    grid = (b_pad // tb,)
    x_slab = _build_input_slab(key, b_pad)

    resident = lambda shape: pl.BlockSpec(shape, lambda i: (0, 0))       # weights stay in VMEM
    out = pl.pallas_call(
        _decoder_kernel,
        out_shape=jax.ShapeDtypeStruct((b_pad, F_PAD), jnp.bfloat16),    # half the writeback of f32
        grid=grid,
        in_specs=[
            pl.BlockSpec((tb, D_PAD), lambda i: (i, 0)),                 # input slab tile
            resident((D_PAD, h)),                                        # w0  (bias folded, row 127)
            resident((h, h)),                                            # w1h
            resident((D_PAD, h)),                                        # w1x (bias folded)
            resident((h, F_PAD)),                                        # wo over h1
            resident((h, F_PAD)),                                        # wo over h0
            resident((D_PAD, F_PAD)),                                    # wo over x (bias folded)
            resident((F_PAD, F_PAD)),                                    # softmax block-indicator S (f32)
        ],
        out_specs=pl.BlockSpec((tb, F_PAD), lambda i: (i, 0)),
        compiler_params=pltpu.CompilerParams(
            dimension_semantics=("parallel",),                           # shard batch tiles across TCs (v7x)
            vmem_limit_bytes=32 * 1024 * 1024,
        ),
    )(x_slab, *params)
    return out[:count, :N_FEATURES].astype(jnp.float32)


# ---------------------------------------------------------------------------
# Deterministic parameter init (torch.nn.Linear-style uniform) + TPU packing
# ---------------------------------------------------------------------------
def _linear_init(key, fan_in, fan_out):
    kw, kb = jax.random.split(key)
    bound = 1.0 / float(fan_in) ** 0.5
    w = jax.random.uniform(kw, (fan_in, fan_out), jnp.float32, -bound, bound)
    b = jax.random.uniform(kb, (fan_out,), jnp.float32, -bound, bound)
    return w, b


def init_decoder_params(key):
    h = N_UNITS_HIDDEN
    k0, k1, k2 = jax.random.split(key, 3)
    w0, b0 = _linear_init(k0, D_IN, h)                     # layer 0
    w1, b1 = _linear_init(k1, h + D_IN, h)                 # layer 1 (input = [h0, x])
    wo, bo = _linear_init(k2, 2 * h + D_IN, N_FEATURES)    # out (input = [h1, h0, x])

    # Lane-pad, folding each bias into weight row 127 (x lane 127 == 1).
    w0p = jnp.zeros((D_PAD, h), jnp.float32).at[:D_IN].set(w0).at[D_PAD - 1].set(b0)
    w1h = w1[:h]                                           # (64, 64)
    w1xp = (jnp.zeros((D_PAD, h), jnp.float32)
            .at[:D_IN].set(w1[h:]).at[D_PAD - 1].set(b1))
    woh1 = jnp.zeros((h, F_PAD), jnp.float32).at[:, :N_FEATURES].set(wo[:h])
    woh0 = jnp.zeros((h, F_PAD), jnp.float32).at[:, :N_FEATURES].set(wo[h:2 * h])
    woxp = (jnp.zeros((D_PAD, F_PAD), jnp.float32)
            .at[:D_IN, :N_FEATURES].set(wo[2 * h:])
            .at[D_PAD - 1, :N_FEATURES].set(bo))

    # Softmax block-indicator matrix for the MXU block-sum trick (kept f32).
    s_ind = np.zeros((F_PAD, F_PAD), np.float32)
    off = 0
    for act, width in LAYOUT:
        if act == "softmax":
            s_ind[off:off + width, off:off + width] = 1.0
        off += width

    bf = lambda a: a.astype(jnp.bfloat16)                  # bf16 MXU operands
    return (bf(w0p), bf(w1h), bf(w1xp), bf(woh1), bf(woh0), bf(woxp),
            jnp.asarray(s_ind))


# ---------------------------------------------------------------------------
# TabularVAE.forward equivalent
# ---------------------------------------------------------------------------
def tabular_vae_forward(key, count, params, tb=2048):
    # VAE.generate: noise ~ N(0,1) of (count, n_units_embedding) plus a sampled
    # one-hot conditional, decoded by the residual MLP with per-block
    # tanh/softmax output activations.
    return decoder_forward(key, count, params, tb=tb)


# ---------------------------------------------------------------------------
# Pure-JAX reference (same math, no Pallas) for correctness checking
# ---------------------------------------------------------------------------
def _reference_forward(key, count, params, tb):
    b_pad = pl.cdiv(count, tb) * tb
    x = _build_input_slab(key, b_pad).astype(jnp.float32)
    w0, w1h, w1x, woh1, woh0, wox, _ = [jnp.asarray(p, jnp.float32) for p in params]
    h0 = _leaky_relu(x @ w0)
    h0b = h0.astype(jnp.bfloat16).astype(jnp.float32)      # mimic kernel bf16 re-cast
    h1 = _leaky_relu(h0b @ w1h + x @ w1x)
    h1b = h1.astype(jnp.bfloat16).astype(jnp.float32)
    y = (h1b @ woh1 + h0b @ woh0 + x @ wox)[:count, :N_FEATURES]
    outs, off = [], 0
    for act, width in LAYOUT:
        blk = y[:, off:off + width]
        outs.append(jax.nn.softmax(blk, axis=-1) if act == "softmax" else jnp.tanh(blk))
        off += width
    return jnp.concatenate(outs, axis=-1)


if __name__ == "__main__":
    key = jax.random.PRNGKey(0)
    k_params, k_gen = jax.random.split(key)
    params = init_decoder_params(k_params)

    count = 1000                                   # small demo batch (grid of 4 tiles at tb=256)
    out = tabular_vae_forward(k_gen, count, params, tb=256)
    out = jax.block_until_ready(out)

    assert out.shape == (count, N_FEATURES)
    assert bool(jnp.all(jnp.isfinite(out)))

    # Property checks: softmax blocks are valid distributions, tanh blocks bounded.
    off = 0
    for act, width in LAYOUT:
        blk = out[:, off:off + width]
        if act == "softmax":
            s = jnp.sum(blk, axis=-1)
            assert jnp.allclose(s, 1.0, atol=1e-2), s
            assert bool(jnp.all(blk >= 0.0))
        else:  # tanh
            assert bool(jnp.all(jnp.abs(blk) <= 1.0 + 1e-6))
        off += width

    # Full numerical check against a pure-JAX reference of the same network.
    ref = _reference_forward(k_gen, count, params, tb=256)
    assert jnp.allclose(out, ref, atol=2e-2), float(jnp.max(jnp.abs(out - ref)))

    print("KERNEL_OK")
</pallas_src>

<mosaic_0001>
module attributes {stable_mosaic.version = 11 : i64} {
  func.func @_decoder_kernel(%arg0: i32, %arg1: memref<256x128xbf16, #tpu.memory_space<vmem>>, %arg2: memref<128x64xbf16, #tpu.memory_space<vmem>>, %arg3: memref<64x64xbf16, #tpu.memory_space<vmem>>, %arg4: memref<128x64xbf16, #tpu.memory_space<vmem>>, %arg5: memref<64x128xbf16, #tpu.memory_space<vmem>>, %arg6: memref<64x128xbf16, #tpu.memory_space<vmem>>, %arg7: memref<128x128xbf16, #tpu.memory_space<vmem>>, %arg8: memref<128x128xf32, #tpu.memory_space<vmem>>, %arg9: memref<256x128xbf16, #tpu.memory_space<vmem>>) attributes {dimension_semantics = [#tpu.dimension_semantics<parallel>], iteration_bounds = array<i64: 4>, scalar_prefetch = 0 : i64, scratch_operands = 0 : i64, tpu.core_type = #tpu.core_type<tc>, window_params = [{transform_indices = @transform_0, window_bounds = array<i64: 256, 128>}, {pipeline_mode = #tpu.pipeline_mode<synchronous>, transform_indices = @transform_1, window_bounds = array<i64: 128, 64>}, {pipeline_mode = #tpu.pipeline_mode<synchronous>, transform_indices = @transform_2, window_bounds = array<i64: 64, 64>}, {pipeline_mode = #tpu.pipeline_mode<synchronous>, transform_indices = @transform_3, window_bounds = array<i64: 128, 64>}, {pipeline_mode = #tpu.pipeline_mode<synchronous>, transform_indices = @transform_4, window_bounds = array<i64: 64, 128>}, {pipeline_mode = #tpu.pipeline_mode<synchronous>, transform_indices = @transform_5, window_bounds = array<i64: 64, 128>}, {pipeline_mode = #tpu.pipeline_mode<synchronous>, transform_indices = @transform_6, window_bounds = array<i64: 128, 128>}, {pipeline_mode = #tpu.pipeline_mode<synchronous>, transform_indices = @transform_7, window_bounds = array<i64: 128, 128>}, {transform_indices = @transform_8, window_bounds = array<i64: 256, 128>}]} {
    %c0 = arith.constant 0 : index
    %c0_0 = arith.constant 0 : index
    %0 = vector.load %arg1[%c0, %c0_0] : memref<256x128xbf16, #tpu.memory_space<vmem>>, vector<256x128xbf16>
    %c0_1 = arith.constant 0 : index
    %c0_2 = arith.constant 0 : index
    %1 = vector.load %arg2[%c0_1, %c0_2] : memref<128x64xbf16, #tpu.memory_space<vmem>>, vector<128x64xbf16>
    %cst = arith.constant dense<0.000000e+00> : vector<256x64xf32>
    %2 = tpu.matmul %0, %1, %cst {dimension_numbers = #tpu.dot_dimension_numbers<[1], [0], [0], [1], [0, 0, 1, 1], [], []>} : vector<256x128xbf16>, vector<128x64xbf16>, vector<256x64xf32> -> vector<256x64xf32>
    %cst_3 = arith.constant 0.000000e+00 : f32
    %3 = vector.broadcast %cst_3 : f32 to vector<256x64xf32>
    %4 = arith.cmpf oge, %2, %3 : vector<256x64xf32>
    %cst_4 = arith.constant 0.00999999977 : f32
    %5 = vector.broadcast %cst_4 : f32 to vector<256x64xf32>
    %6 = arith.mulf %5, %2 : vector<256x64xf32>
    %7 = arith.select %4, %2, %6 : vector<256x64xi1>, vector<256x64xf32>
    %8 = arith.truncf %7 : vector<256x64xf32> to vector<256x64xbf16>
    %c0_5 = arith.constant 0 : index
    %c0_6 = arith.constant 0 : index
    %9 = vector.load %arg3[%c0_5, %c0_6] : memref<64x64xbf16, #tpu.memory_space<vmem>>, vector<64x64xbf16>
    %cst_7 = arith.constant dense<0.000000e+00> : vector<256x64xf32>
    %10 = tpu.matmul %8, %9, %cst_7 {dimension_numbers = #tpu.dot_dimension_numbers<[1], [0], [0], [1], [0, 0, 1, 1], [], []>} : vector<256x64xbf16>, vector<64x64xbf16>, vector<256x64xf32> -> vector<256x64xf32>
    %c0_8 = arith.constant 0 : index
    %c0_9 = arith.constant 0 : index
    %11 = vector.load %arg4[%c0_8, %c0_9] : memref<128x64xbf16, #tpu.memory_space<vmem>>, vector<128x64xbf16>
    %cst_10 = arith.constant dense<0.000000e+00> : vector<256x64xf32>
    %12 = tpu.matmul %0, %11, %cst_10 {dimension_numbers = #tpu.dot_dimension_numbers<[1], [0], [0], [1], [0, 0, 1, 1], [], []>} : vector<256x128xbf16>, vector<128x64xbf16>, vector<256x64xf32> -> vector<256x64xf32>
    %13 = arith.addf %10, %12 : vector<256x64xf32>
    %cst_11 = arith.constant 0.000000e+00 : f32
    %14 = vector.broadcast %cst_11 : f32 to vector<256x64xf32>
    %15 = arith.cmpf oge, %13, %14 : vector<256x64xf32>
    %cst_12 = arith.constant 0.00999999977 : f32
    %16 = vector.broadcast %cst_12 : f32 to vector<256x64xf32>
    %17 = arith.mulf %16, %13 : vector<256x64xf32>
    %18 = arith.select %15, %13, %17 : vector<256x64xi1>, vector<256x64xf32>
    %19 = arith.truncf %18 : vector<256x64xf32> to vector<256x64xbf16>
    %c0_13 = arith.constant 0 : index
    %c0_14 = arith.constant 0 : index
    %20 = vector.load %arg5[%c0_13, %c0_14] : memref<64x128xbf16, #tpu.memory_space<vmem>>, vector<64x128xbf16>
    %cst_15 = arith.constant dense<0.000000e+00> : vector<256x128xf32>
    %21 = tpu.matmul %19, %20, %cst_15 {dimension_numbers = #tpu.dot_dimension_numbers<[1], [0], [0], [1], [0, 0, 1, 1], [], []>} : vector<256x64xbf16>, vector<64x128xbf16>, vector<256x128xf32> -> vector<256x128xf32>
    %c0_16 = arith.constant 0 : index
    %c0_17 = arith.constant 0 : index
    %22 = vector.load %arg6[%c0_16, %c0_17] : memref<64x128xbf16, #tpu.memory_space<vmem>>, vector<64x128xbf16>
    %cst_18 = arith.constant dense<0.000000e+00> : vector<256x128xf32>
    %23 = tpu.matmul %8, %22, %cst_18 {dimension_numbers = #tpu.dot_dimension_numbers<[1], [0], [0], [1], [0, 0, 1, 1], [], []>} : vector<256x64xbf16>, vector<64x128xbf16>, vector<256x128xf32> -> vector<256x128xf32>
    %24 = arith.addf %21, %23 : vector<256x128xf32>
    %c0_19 = arith.constant 0 : index
    %c0_20 = arith.constant 0 : index
    %25 = vector.load %arg7[%c0_19, %c0_20] : memref<128x128xbf16, #tpu.memory_space<vmem>>, vector<128x128xbf16>
    %cst_21 = arith.constant dense<0.000000e+00> : vector<256x128xf32>
    %26 = tpu.matmul %0, %25, %cst_21 {dimension_numbers = #tpu.dot_dimension_numbers<[1], [0], [0], [1], [0, 0, 1, 1], [], []>} : vector<256x128xbf16>, vector<128x128xbf16>, vector<256x128xf32> -> vector<256x128xf32>
    %27 = arith.addf %24, %26 : vector<256x128xf32>
    %28 = tpu.iota {dimensions = array<i32: 1>} : vector<1x128xi32>
    %c0_i32 = arith.constant 0 : i32
    %29 = vector.broadcast %c0_i32 : i32 to vector<1x128xi32>
    %30 = arith.cmpi slt, %28, %29 : vector<1x128xi32>
    %c0_i32_22 = arith.constant 0 : i32
    %31 = vector.broadcast %c0_i32_22 : i32 to vector<1x128xi32>
    %32 = arith.cmpi slt, %28, %31 : vector<1x128xi32>
    %c0_i32_23 = arith.constant 0 : i32
    %33 = vector.broadcast %c0_i32_23 : i32 to vector<1x128xi32>
    %34 = arith.cmpi sge, %28, %33 : vector<1x128xi32>
    %c1_i32 = arith.constant 1 : i32
    %35 = vector.broadcast %c1_i32 : i32 to vector<1x128xi32>
    %36 = arith.cmpi slt, %28, %35 : vector<1x128xi32>
    %37 = arith.andi %34, %36 : vector<1x128xi1>
    %38 = arith.ori %32, %37 : vector<1x128xi1>
    %c1_i32_24 = arith.constant 1 : i32
    %39 = vector.broadcast %c1_i32_24 : i32 to vector<1x128xi32>
    %40 = arith.cmpi sge, %28, %39 : vector<1x128xi32>
    %c4_i32 = arith.constant 4 : i32
    %41 = vector.broadcast %c4_i32 : i32 to vector<1x128xi32>
    %42 = arith.cmpi slt, %28, %41 : vector<1x128xi32>
    %43 = arith.andi %40, %42 : vector<1x128xi1>
    %44 = arith.ori %30, %43 : vector<1x128xi1>
    %c4_i32_25 = arith.constant 4 : i32
    %45 = vector.broadcast %c4_i32_25 : i32 to vector<1x128xi32>
    %46 = arith.cmpi sge, %28, %45 : vector<1x128xi32>
    %c5_i32 = arith.constant 5 : i32
    %47 = vector.broadcast %c5_i32 : i32 to vector<1x128xi32>
    %48 = arith.cmpi slt, %28, %47 : vector<1x128xi32>
    %49 = arith.andi %46, %48 : vector<1x128xi1>
    %50 = arith.ori %38, %49 : vector<1x128xi1>
    %c5_i32_26 = arith.constant 5 : i32
    %51 = vector.broadcast %c5_i32_26 : i32 to vector<1x128xi32>
    %52 = arith.cmpi sge, %28, %51 : vector<1x128xi32>
    %c8_i32 = arith.constant 8 : i32
    %53 = vector.broadcast %c8_i32 : i32 to vector<1x128xi32>
    %54 = arith.cmpi slt, %28, %53 : vector<1x128xi32>
    %55 = arith.andi %52, %54 : vector<1x128xi1>
    %56 = arith.ori %44, %55 : vector<1x128xi1>
    %c8_i32_27 = arith.constant 8 : i32
    %57 = vector.broadcast %c8_i32_27 : i32 to vector<1x128xi32>
    %58 = arith.cmpi sge, %28, %57 : vector<1x128xi32>
    %c12_i32 = arith.constant 12 : i32
    %59 = vector.broadcast %c12_i32 : i32 to vector<1x128xi32>
    %60 = arith.cmpi slt, %28, %59 : vector<1x128xi32>
    %61 = arith.andi %58, %60 : vector<1x128xi1>
    %62 = arith.ori %56, %61 : vector<1x128xi1>
    %cst_28 = arith.constant 0xFF800000 : f32
    %63 = vector.shape_cast %62 : vector<1x128xi1> to vector<1x128xi1>
    %64 = vector.broadcast %63 : vector<1x128xi1> to vector<256x128xi1>
    %65 = vector.broadcast %cst_28 : f32 to vector<256x128xf32>
    %66 = arith.select %64, %27, %65 : vector<256x128xi1>, vector<256x128xf32>
    %cst_29 = arith.constant dense<0xFF800000> : vector<256xf32>
    %67 = vector.multi_reduction <maximumf>, %66, %cst_29 [1] : vector<256x128xf32> to vector<256xf32>
    %68 = vector.shape_cast %67 : vector<256xf32> to vector<256x1xf32>
    %69 = vector.broadcast %68 : vector<256x1xf32> to vector<256x128xf32>
    %70 = arith.subf %27, %69 : vector<256x128xf32>
    %71 = math.absf %27 : vector<256x128xf32>
    %cst_30 = arith.constant -2.000000e+00 : f32
    %72 = vector.broadcast %cst_30 : f32 to vector<256x128xf32>
    %73 = arith.mulf %72, %71 : vector<256x128xf32>
    %cst_31 = arith.constant 0.000000e+00 : f32
    %74 = vector.shape_cast %50 : vector<1x128xi1> to vector<1x128xi1>
    %75 = vector.broadcast %74 : vector<1x128xi1> to vector<256x128xi1>
    %76 = vector.broadcast %cst_31 : f32 to vector<256x128xf32>
    %77 = arith.select %75, %73, %76 : vector<256x128xi1>, vector<256x128xf32>
    %78 = vector.shape_cast %62 : vector<1x128xi1> to vector<1x128xi1>
    %79 = vector.broadcast %78 : vector<1x128xi1> to vector<256x128xi1>
    %80 = arith.select %79, %70, %77 : vector<256x128xi1>, vector<256x128xf32>
    %81 = math.exp %80 : vector<256x128xf32>
    %c0_32 = arith.constant 0 : index
    %c0_33 = arith.constant 0 : index
    %82 = vector.load %arg8[%c0_32, %c0_33] : memref<128x128xf32, #tpu.memory_space<vmem>>, vector<128x128xf32>
    %cst_34 = arith.constant dense<0.000000e+00> : vector<256x128xf32>
    %83 = tpu.matmul %81, %82, %cst_34 {dimension_numbers = #tpu.dot_dimension_numbers<[1], [0], [0], [1], [0, 0, 1, 1], [], []>} : vector<256x128xf32>, vector<128x128xf32>, vector<256x128xf32> -> vector<256x128xf32>
    %cst_35 = arith.constant 1.000000e-30 : f32
    %84 = vector.broadcast %cst_35 : f32 to vector<256x128xf32>
    %85 = arith.maximumf %83, %84 : vector<256x128xf32>
    %cst_36 = arith.constant 1.000000e+00 : f32
    %86 = vector.broadcast %cst_36 : f32 to vector<256x128xf32>
    %87 = arith.addf %86, %81 : vector<256x128xf32>
    %88 = vector.shape_cast %62 : vector<1x128xi1> to vector<1x128xi1>
    %89 = vector.broadcast %88 : vector<1x128xi1> to vector<256x128xi1>
    %90 = arith.select %89, %85, %87 : vector<256x128xi1>, vector<256x128xf32>
    %cst_37 = arith.constant 1.000000e+00 : f32
    %91 = vector.broadcast %cst_37 : f32 to vector<256x128xf32>
    %92 = arith.divf %91, %90 : vector<256x128xf32>
    %cst_38 = arith.constant 0.000000e+00 : f32
    %93 = vector.broadcast %cst_38 : f32 to vector<256x128xf32>
    %94 = arith.cmpf oge, %27, %93 : vector<256x128xf32>
    %cst_39 = arith.constant 1.000000e+00 : f32
    %cst_40 = arith.constant -1.000000e+00 : f32
    %95 = vector.broadcast %cst_39 : f32 to vector<256x128xf32>
    %96 = vector.broadcast %cst_40 : f32 to vector<256x128xf32>
    %97 = arith.select %94, %95, %96 : vector<256x128xi1>, vector<256x128xf32>
    %cst_41 = arith.constant 1.000000e+00 : f32
    %98 = vector.broadcast %cst_41 : f32 to vector<256x128xf32>
    %99 = arith.subf %98, %81 : vector<256x128xf32>
    %100 = arith.mulf %97, %99 : vector<256x128xf32>
    %101 = arith.mulf %100, %92 : vector<256x128xf32>
    %102 = arith.mulf %81, %92 : vector<256x128xf32>
    %cst_42 = arith.constant 0.000000e+00 : f32
    %103 = vector.shape_cast %50 : vector<1x128xi1> to vector<1x128xi1>
    %104 = vector.broadcast %103 : vector<1x128xi1> to vector<256x128xi1>
    %105 = vector.broadcast %cst_42 : f32 to vector<256x128xf32>
    %106 = arith.select %104, %101, %105 : vector<256x128xi1>, vector<256x128xf32>
    %107 = vector.shape_cast %62 : vector<1x128xi1> to vector<1x128xi1>
    %108 = vector.broadcast %107 : vector<1x128xi1> to vector<256x128xi1>
    %109 = arith.select %108, %102, %106 : vector<256x128xi1>, vector<256x128xf32>
    %110 = arith.truncf %109 : vector<256x128xf32> to vector<256x128xbf16>
    %c0_43 = arith.constant 0 : index
    %c0_44 = arith.constant 0 : index
    %111 = vector.load %arg9[%c0_43, %c0_44] : memref<256x128xbf16, #tpu.memory_space<vmem>>, vector<256x128xbf16>
    tpu.vector_store %arg9[%c0_43, %c0_44], %110 {strides = array<i32>} : memref<256x128xbf16, #tpu.memory_space<vmem>>, vector<256x128xbf16>,
    return
  }
  func.func @transform_0(%arg0: i32) -> (i32, i32) {
    %c0_i32 = arith.constant 0 : i32
    %c0_i32_0 = arith.constant 0 : i32
    return %arg0, %c0_i32 : i32, i32
  }
  func.func @transform_1(%arg0: i32) -> (i32, i32) {
    %c0_i32 = arith.constant 0 : i32
    %c0_i32_0 = arith.constant 0 : i32
    %c0_i32_1 = arith.constant 0 : i32
    return %c0_i32, %c0_i32_0 : i32, i32
  }
  func.func @transform_2(%arg0: i32) -> (i32, i32) {
    %c0_i32 = arith.constant 0 : i32
    %c0_i32_0 = arith.constant 0 : i32
    %c0_i32_1 = arith.constant 0 : i32
    return %c0_i32, %c0_i32_0 : i32, i32
  }
  func.func @transform_3(%arg0: i32) -> (i32, i32) {
    %c0_i32 = arith.constant 0 : i32
    %c0_i32_0 = arith.constant 0 : i32
    %c0_i32_1 = arith.constant 0 : i32
    return %c0_i32, %c0_i32_0 : i32, i32
  }
  func.func @transform_4(%arg0: i32) -> (i32, i32) {
    %c0_i32 = arith.constant 0 : i32
    %c0_i32_0 = arith.constant 0 : i32
    %c0_i32_1 = arith.constant 0 : i32
    return %c0_i32, %c0_i32_0 : i32, i32
  }
  func.func @transform_5(%arg0: i32) -> (i32, i32) {
    %c0_i32 = arith.constant 0 : i32
    %c0_i32_0 = arith.constant 0 : i32
    %c0_i32_1 = arith.constant 0 : i32
    return %c0_i32, %c0_i32_0 : i32, i32
  }
  func.func @transform_6(%arg0: i32) -> (i32, i32) {
    %c0_i32 = arith.constant 0 : i32
    %c0_i32_0 = arith.constant 0 : i32
    %c0_i32_1 = arith.constant 0 : i32
    return %c0_i32, %c0_i32_0 : i32, i32
  }
  func.func @transform_7(%arg0: i32) -> (i32, i32) {
    %c0_i32 = arith.constant 0 : i32
    %c0_i32_0 = arith.constant 0 : i32
    %c0_i32_1 = arith.constant 0 : i32
    return %c0_i32, %c0_i32_0 : i32, i32
  }
  func.func @transform_8(%arg0: i32) -> (i32, i32) {
    %c0_i32 = arith.constant 0 : i32
    %c0_i32_0 = arith.constant 0 : i32
    return %arg0, %c0_i32 : i32, i32
  }
}

</mosaic_0001>

<llo_original>
// kernel: decoder_forward.1
$region0: #{decoder_forward.1}
  #allocation0 [shape = 'u32[]', space=smem, size = 0x4, offset = 0x4, fixed_abs, tag = 'smem constant byte address 0x4 - core index']
  #allocation1 [shape = 'u32[72,128]{1,0:T(1,128)}', space=vmem, size = 0x9000, scoped, tag = 'internal scratch']
  %s0 = inlined_call_operand.vmem [shape: bf16[1024,128], index: 0, kind: input, shape index: {}]
  %s1 = inlined_call_operand.vmem [shape: bf16[128,64], index: 1, kind: input, shape index: {}]
  %s2 = inlined_call_operand.vmem [shape: bf16[64,64], index: 2, kind: input, shape index: {}]
  %s3 = inlined_call_operand.vmem [shape: bf16[128,64], index: 3, kind: input, shape index: {}]
  %s4 = inlined_call_operand.vmem [shape: bf16[64,128], index: 4, kind: input, shape index: {}]
  %s5 = inlined_call_operand.vmem [shape: bf16[64,128], index: 5, kind: input, shape index: {}]
  %s6 = inlined_call_operand.vmem [shape: bf16[128,128], index: 6, kind: input, shape index: {}]
  %s7 = inlined_call_operand.vmem [shape: f32[128,128], index: 7, kind: input, shape index: {}]
  %s8 = inlined_call_operand.vmem [shape: bf16[1024,128], index: 8, kind: output, shape index: {}]
  %s9 = sld [smem:[#allocation0]]
  $region65: #{decoder_forward.1} parent=0
    _
  %s11 = ssub.s32 1, %s9
  %s12 = scalar_select 0, %s11, %s9
  loop: start=0, step=1, limit=6
  $region2: #{decoder_forward.1} parent=0 // loop_pre_header
    _
  $region3: #{decoder_forward.1} parent=0 // loop_header
    %s14 = sphi 0, %s18
    %p15 = scmp.ge.s32.totalorder %s14, 6
    %s24 = sphi 0, %s26
    %s27 = sphi 0, %s24
    %s28 = sphi 0, %s27
    %s44 = sphi 0, %s28
    %s48 = sphi 0, %s48
    %s50 = sphi 0, %s48
    %s51 = sphi 0, %s50
    %s65 = sphi 0, %s51
    %s69 = sphi 0, %s69
    %s71 = sphi 0, %s69
    %s72 = sphi 0, %s71
    %s86 = sphi 0, %s72
    %s90 = sphi 0, %s90
    %s92 = sphi 0, %s90
    %s93 = sphi 0, %s92
    %s107 = sphi 0, %s93
    %s111 = sphi 0, %s111
    %s113 = sphi 0, %s111
    %s114 = sphi 0, %s113
    %s128 = sphi 0, %s114
    %s132 = sphi 0, %s132
    %s134 = sphi 0, %s132
    %s135 = sphi 0, %s134
    %s149 = sphi 0, %s135
    %s153 = sphi 0, %s153
    %s155 = sphi 0, %s153
    %s156 = sphi 0, %s155
    %s170 = sphi 0, %s156
    %s174 = sphi 0, %s174
    %s176 = sphi 0, %s174
    %s177 = sphi 0, %s176
    %s191 = sphi 0, %s177
    %s197 = sphi 0, %s199
    %s200 = sphi 0, %s197
    %s201 = sphi 0, %s200
    %s217 = sphi 0, %s201
  $region4: #{decoder_forward.1} parent=0 // loop_header_branch
    %17 = sbr.rel (%p15) target = $region8
  $region5: #{decoder_forward.1} parent=0 // loop_body
    %s19 = ssub.s32 %s14, 1
    %s20 = ssub.s32 %s14, 2
    %s21 = sadd.s32 %s14, 1
    %s22 = ssub.s32 %s14, %s21
    %p23 = scmp.eq.s32.totalorder %s22, 0
    %s25 = sadd.s32 %s24, 1
    %s26 = scalar_select %p23, %s24, %s25
    %p29 = pneg %p23
    %p30 = scmp.eq.s32.totalorder %s14, 3
    %p31 = por %p29, %p30
    %p32 = scmp.ne.s32.totalorder %s24, %s27
    %p33 = scmp.eq.s32.totalorder %s14, 0
    %p34 = por %p32, %p33
    %p35 = scmp.ne.s32.totalorder %s24, %s27
    %p36 = scmp.eq.s32.totalorder %s19, 3
    %p37 = por %p35, %p36
    %p38 = scmp.ne.s32.totalorder %s27, %s28
    %p39 = scmp.eq.s32.totalorder %s19, 0
    %p40 = por %p38, %p39
    %p41 = scmp.ne.s32.totalorder %s27, %s28
    %p42 = scmp.eq.s32.totalorder %s20, 3
    %p43 = por %p41, %p42
    %p45 = scmp.ne.s32.totalorder %s28, %s44
    %p46 = scmp.eq.s32.totalorder %s20, 0
    %p47 = por %p45, %p46
    %s49 = sadd.s32 %s48, 1
    %p52 = scmp.eq.s32.totalorder %s14, 3
    %p53 = scmp.ne.s32.totalorder %s48, %s50
    %p54 = scmp.eq.s32.totalorder %s14, 0
    %p55 = por %p53, %p54
    %p56 = scmp.ne.s32.totalorder %s48, %s50
    %p57 = scmp.eq.s32.totalorder %s19, 3
    %p58 = por %p56, %p57
    %p59 = scmp.ne.s32.totalorder %s50, %s51
    %p60 = scmp.eq.s32.totalorder %s19, 0
    %p61 = por %p59, %p60
    %p62 = scmp.ne.s32.totalorder %s50, %s51
    %p63 = scmp.eq.s32.totalorder %s20, 3
    %p64 = por %p62, %p63
    %p66 = scmp.ne.s32.totalorder %s51, %s65
    %p67 = scmp.eq.s32.totalorder %s20, 0
    %p68 = por %p66, %p67
    %s70 = sadd.s32 %s69, 1
    %p73 = scmp.eq.s32.totalorder %s14, 3
    %p74 = scmp.ne.s32.totalorder %s69, %s71
    %p75 = scmp.eq.s32.totalorder %s14, 0
    %p76 = por %p74, %p75
    %p77 = scmp.ne.s32.totalorder %s69, %s71
    %p78 = scmp.eq.s32.totalorder %s19, 3
    %p79 = por %p77, %p78
    %p80 = scmp.ne.s32.totalorder %s71, %s72
    %p81 = scmp.eq.s32.totalorder %s19, 0
    %p82 = por %p80, %p81
    %p83 = scmp.ne.s32.totalorder %s71, %s72
    %p84 = scmp.eq.s32.totalorder %s20, 3
    %p85 = por %p83, %p84
    %p87 = scmp.ne.s32.totalorder %s72, %s86
    %p88 = scmp.eq.s32.totalorder %s20, 0
    %p89 = por %p87, %p88
    %s91 = sadd.s32 %s90, 1
    %p94 = scmp.eq.s32.totalorder %s14, 3
    %p95 = scmp.ne.s32.totalorder %s90, %s92
    %p96 = scmp.eq.s32.totalorder %s14, 0
    %p97 = por %p95, %p96
    %p98 = scmp.ne.s32.totalorder %s90, %s92
    %p99 = scmp.eq.s32.totalorder %s19, 3
    %p100 = por %p98, %p99
    %p101 = scmp.ne.s32.totalorder %s92, %s93
    %p102 = scmp.eq.s32.totalorder %s19, 0
    %p103 = por %p101, %p102
    %p104 = scmp.ne.s32.totalorder %s92, %s93
    %p105 = scmp.eq.s32.totalorder %s20, 3
    %p106 = por %p104, %p105
    %p108 = scmp.ne.s32.totalorder %s93, %s107
    %p109 = scmp.eq.s32.totalorder %s20, 0
    %p110 = por %p108, %p109
    %s112 = sadd.s32 %s111, 1
    %p115 = scmp.eq.s32.totalorder %s14, 3
    %p116 = scmp.ne.s32.totalorder %s111, %s113
    %p117 = scmp.eq.s32.totalorder %s14, 0
    %p118 = por %p116, %p117
    %p119 = scmp.ne.s32.totalorder %s111, %s113
    %p120 = scmp.eq.s32.totalorder %s19, 3
    %p121 = por %p119, %p120
    %p122 = scmp.ne.s32.totalorder %s113, %s114
    %p123 = scmp.eq.s32.totalorder %s19, 0
    %p124 = por %p122, %p123
    %p125 = scmp.ne.s32.totalorder %s113, %s114
    %p126 = scmp.eq.s32.totalorder %s20, 3
    %p127 = por %p125, %p126
    %p129 = scmp.ne.s32.totalorder %s114, %s128
    %p130 = scmp.eq.s32.totalorder %s20, 0
    %p131 = por %p129, %p130
    %s133 = sadd.s32 %s132, 1
    %p136 = scmp.eq.s32.totalorder %s14, 3
    %p137 = scmp.ne.s32.totalorder %s132, %s134
    %p138 = scmp.eq.s32.totalorder %s14, 0
    %p139 = por %p137, %p138
    %p140 = scmp.ne.s32.totalorder %s132, %s134
    %p141 = scmp.eq.s32.totalorder %s19, 3
    %p142 = por %p140, %p141
    %p143 = scmp.ne.s32.totalorder %s134, %s135
    %p144 = scmp.eq.s32.totalorder %s19, 0
    %p145 = por %p143, %p144
    %p146 = scmp.ne.s32.totalorder %s134, %s135
    %p147 = scmp.eq.s32.totalorder %s20, 3
    %p148 = por %p146, %p147
    %p150 = scmp.ne.s32.totalorder %s135, %s149
    %p151 = scmp.eq.s32.totalorder %s20, 0
    %p152 = por %p150, %p151
    %s154 = sadd.s32 %s153, 1
    %p157 = scmp.eq.s32.totalorder %s14, 3
    %p158 = scmp.ne.s32.totalorder %s153, %s155
    %p159 = scmp.eq.s32.totalorder %s14, 0
    %p160 = por %p158, %p159
    %p161 = scmp.ne.s32.totalorder %s153, %s155
    %p162 = scmp.eq.s32.totalorder %s19, 3
    %p163 = por %p161, %p162
    %p164 = scmp.ne.s32.totalorder %s155, %s156
    %p165 = scmp.eq.s32.totalorder %s19, 0
    %p166 = por %p164, %p165
    %p167 = scmp.ne.s32.totalorder %s155, %s156
    %p168 = scmp.eq.s32.totalorder %s20, 3
    %p169 = por %p167, %p168
    %p171 = scmp.ne.s32.totalorder %s156, %s170
    %p172 = scmp.eq.s32.totalorder %s20, 0
    %p173 = por %p171, %p172
    %s175 = sadd.s32 %s174, 1
    %p178 = scmp.eq.s32.totalorder %s14, 3
    %p179 = scmp.ne.s32.totalorder %s174, %s176
    %p180 = scmp.eq.s32.totalorder %s14, 0
    %p181 = por %p179, %p180
    %p182 = scmp.ne.s32.totalorder %s174, %s176
    %p183 = scmp.eq.s32.totalorder %s19, 3
    %p184 = por %p182, %p183
    %p185 = scmp.ne.s32.totalorder %s176, %s177
    %p186 = scmp.eq.s32.totalorder %s19, 0
    %p187 = por %p185, %p186
    %p188 = scmp.ne.s32.totalorder %s176, %s177
    %p189 = scmp.eq.s32.totalorder %s20, 3
    %p190 = por %p188, %p189
    %p192 = scmp.ne.s32.totalorder %s177, %s191
    %p193 = scmp.eq.s32.totalorder %s20, 0
    %p194 = por %p192, %p193
    %s195 = ssub.s32 %s14, %s21
    %p196 = scmp.eq.s32.totalorder %s195, 0
    %s198 = sadd.s32 %s197, 1
    %s199 = scalar_select %p196, %s197, %s198
    %p202 = pneg %p196
    %p203 = scmp.eq.s32.totalorder %s14, 3
    %p204 = por %p202, %p203
    %p205 = scmp.ne.s32.totalorder %s197, %s200
    %p206 = scmp.eq.s32.totalorder %s14, 0
    %p207 = por %p205, %p206
    %p208 = scmp.ne.s32.totalorder %s197, %s200
    %p209 = scmp.eq.s32.totalorder %s19, 3
    %p210 = por %p208, %p209
    %p211 = scmp.ne.s32.totalorder %s200, %s201
    %p212 = scmp.eq.s32.totalorder %s19, 0
    %p213 = por %p211, %p212
    %p214 = scmp.ne.s32.totalorder %s200, %s201
    %p215 = scmp.eq.s32.totalorder %s20, 3
    %p216 = por %p214, %p215
    %p218 = scmp.ne.s32.totalorder %s201, %s217
    %p219 = scmp.eq.s32.totalorder %s20, 0
    %p220 = por %p218, %p219
    %p221 = scmp.le.s32.totalorder 1, %s14
    %p222 = scmp.lt.s32.totalorder %s14, 5
    %p223 = pnand %p221, %p222
    %p224 = pneg %p223
    // Predicated region
    $region9: #{decoder_forward.1} parent=5 // pred_check
      _
    $region10: #{decoder_forward.1} parent=5 // pred_check_branch
      %226 = sbr.rel (%p223) target = $region12
    $region11: #{decoder_forward.1} parent=5 // pred_region
      %s227 = ssub.s32 %s14, 1
      // Predicated region
      $region13: #{decoder_forward.1} parent=11 // pred_check
        %p228 = pneg %p61
      $region14: #{decoder_forward.1} parent=11 // pred_check_branch
        %230 = sbr.rel (%p228) target = $region16
      $region15: #{decoder_forward.1} parent=11 // pred_region
        _
      $region16: #{decoder_forward.1} parent=11 // pred_fallthru
        _
      // Predicated region
      $region17: #{decoder_forward.1} parent=11 // pred_check
        %p231 = pneg %p82
      $region18: #{decoder_forward.1} parent=11 // pred_check_branch
        %233 = sbr.rel (%p231) target = $region20
      $region19: #{decoder_forward.1} parent=11 // pred_region
        _
      $region20: #{decoder_forward.1} parent=11 // pred_fallthru
        _
      // Predicated region
      $region21: #{decoder_forward.1} parent=11 // pred_check
        %p234 = pneg %p103
      $region22: #{decoder_forward.1} parent=11 // pred_check_branch
        %236 = sbr.rel (%p234) target = $region24
      $region23: #{decoder_forward.1} parent=11 // pred_region
        _
      $region24: #{decoder_forward.1} parent=11 // pred_fallthru
        _
      // Predicated region
      $region25: #{decoder_forward.1} parent=11 // pred_check
        %p237 = pneg %p124
      $region26: #{decoder_forward.1} parent=11 // pred_check_branch
        %239 = sbr.rel (%p237) target = $region28
      $region27: #{decoder_forward.1} parent=11 // pred_region
        _
      $region28: #{decoder_forward.1} parent=11 // pred_fallthru
        _
      // Predicated region
      $region29: #{decoder_forward.1} parent=11 // pred_check
        %p240 = pneg %p145
      $region30: #{decoder_forward.1} parent=11 // pred_check_branch
        %242 = sbr.rel (%p240) target = $region32
      $region31: #{decoder_forward.1} parent=11 // pred_region
        _
      $region32: #{decoder_forward.1} parent=11 // pred_fallthru
        _
      // Predicated region
      $region33: #{decoder_forward.1} parent=11 // pred_check
        %p243 = pneg %p166
      $region34: #{decoder_forward.1} parent=11 // pred_check_branch
        %245 = sbr.rel (%p243) target = $region36
      $region35: #{decoder_forward.1} parent=11 // pred_region
        _
      $region36: #{decoder_forward.1} parent=11 // pred_fallthru
        _
      // Predicated region
      $region37: #{decoder_forward.1} parent=11 // pred_check
        %p246 = pneg %p187
      $region38: #{decoder_forward.1} parent=11 // pred_check_branch
        %248 = sbr.rel (%p246) target = $region40
      $region39: #{decoder_forward.1} parent=11 // pred_region
        _
      $region40: #{decoder_forward.1} parent=11 // pred_fallthru
        _
    $region12: #{decoder_forward.1} parent=5 // pred_fallthru
      _
    %p249 = scmp.lt.s32.totalorder %s14, 4
    // Predicated region
    $region41: #{decoder_forward.1} parent=5 // pred_check
      %p250 = pneg %p249
    $region42: #{decoder_forward.1} parent=5 // pred_check_branch
      %252 = sbr.rel (%p250) target = $region44
    $region43: #{decoder_forward.1} parent=5 // pred_region
      // Predicated region
      $region45: #{decoder_forward.1} parent=43 // pred_check
        %p253 = pneg %p34
      $region46: #{decoder_forward.1} parent=43 // pred_check_branch
        %255 = sbr.rel (%p253) target = $region48
      $region47: #{decoder_forward.1} parent=43 // pred_region
        %s256 = smul.u32 32, %s14
        %p257 = scmp.lt.s32.totalorder %s256, 127
        %s258 = scalar_select %p257, %s256, 127
        %s259 = smul.addr %s258, 4
        %s260 = scalar_lea.vmem %s0, %s259
        %s261 = smul.u32 32, %s14
      $region48: #{decoder_forward.1} parent=43 // pred_fallthru
        _
    $region44: #{decoder_forward.1} parent=5 // pred_fallthru
      _
    %p262 = scmp.le.s32.totalorder 1, %s14
    %p263 = scmp.lt.s32.totalorder %s14, 5
    %p264 = pnand %p262, %p263
    %p265 = pneg %p264
    // Predicated region
    $region49: #{decoder_forward.1} parent=5 // pred_check
      _
    $region50: #{decoder_forward.1} parent=5 // pred_check_branch
      %267 = sbr.rel (%p264) target = $region52
    $region51: #{decoder_forward.1} parent=5 // pred_region
      %s268 = ssub.s32 %s14, 1
      %s269 = smul.u32 32, %s19
      %p270 = scmp.lt.s32.totalorder %s269, 127
      %s271 = scalar_select %p270, %s269, 127
      %s272 = smul.addr %s271, 4
      %s273 = scalar_lea.vmem %s0, %s272
      %p274 = pneg %p40
      %p275 = pneg %p37
      %p276 = pneg %p61
      %p277 = pneg %p58
      %p278 = pneg %p82
      %p279 = pneg %p79
      %p280 = pneg %p103
      %p281 = pneg %p100
      %p282 = pneg %p124
      %p283 = pneg %p121
      %p284 = pneg %p145
      %p285 = pneg %p142
      %p286 = pneg %p166
      %p287 = pneg %p163
      %p288 = pneg %p187
      %p289 = pneg %p184
      %p290 = pneg %p213
      %p291 = pneg %p210
      %s292 = smul.u32 32, %s19
      %p293 = scmp.lt.s32.totalorder %s292, 127
      %s294 = scalar_select %p293, %s292, 127
      %s295 = smul.addr %s294, 4
      %s296 = scalar_lea.vmem %s8, %s295
      %s297 = smul.u32 32, %s19
      %p298 = scmp.lt.s32.totalorder %s297, 127
      %s299 = scalar_select %p298, %s297, 127
      %s300 = smul.addr %s299, 4
      %s301 = scalar_lea.vmem %s0, %s300
      %s302 = smul.u32 32, %s19
      %s303 = smul.u32 32, %s19
      %p304 = scmp.lt.s32.totalorder %s303, 127
      %s305 = scalar_select %p304, %s303, 127
      %s306 = smul.addr %s305, 4
      %s307 = scalar_lea.vmem %s8, %s306
      %s308 = smul.u32 32, %s19
      %v310 = vld [vmem:[%s301] sm:$0xf]
      %v311 = vld [vmem:[%s301 + $0x4] sm:$0xf]
      %v312 = vld [vmem:[%s301 + $0x8] sm:$0xf]
      %v313 = vld [vmem:[%s301 + $0xc] sm:$0xf]
      %v314 = vld [vmem:[%s301 + $0x10] sm:$0xf]
      %v315 = vld [vmem:[%s301 + $0x14] sm:$0xf]
      %v316 = vld [vmem:[%s301 + $0x18] sm:$0xf]
      %v317 = vld [vmem:[%s301 + $0x1c] sm:$0xf]
      %v318 = vld [vmem:[%s301 + $0x20] sm:$0xf]
      %v319 = vld [vmem:[%s301 + $0x24] sm:$0xf]
      %v320 = vld [vmem:[%s301 + $0x28] sm:$0xf]
      %v321 = vld [vmem:[%s301 + $0x2c] sm:$0xf]
      %v322 = vld [vmem:[%s301 + $0x30] sm:$0xf]
      %v323 = vld [vmem:[%s301 + $0x34] sm:$0xf]
      %v324 = vld [vmem:[%s301 + $0x38] sm:$0xf]
      %v325 = vld [vmem:[%s301 + $0x3c] sm:$0xf]
      %v326 = vld [vmem:[%s301 + $0x40] sm:$0xf]
      %v327 = vld [vmem:[%s301 + $0x44] sm:$0xf]
      %v328 = vld [vmem:[%s301 + $0x48] sm:$0xf]
      %v329 = vld [vmem:[%s301 + $0x4c] sm:$0xf]
      %v330 = vld [vmem:[%s301 + $0x50] sm:$0xf]
      %v331 = vld [vmem:[%s301 + $0x54] sm:$0xf]
      %v332 = vld [vmem:[%s301 + $0x58] sm:$0xf]
      %v333 = vld [vmem:[%s301 + $0x5c] sm:$0xf]
      %v334 = vld [vmem:[%s301 + $0x60] sm:$0xf]
      %v335 = vld [vmem:[%s301 + $0x64] sm:$0xf]
      %v336 = vld [vmem:[%s301 + $0x68] sm:$0xf]
      %v337 = vld [vmem:[%s301 + $0x6c] sm:$0xf]
      %v338 = vld [vmem:[%s301 + $0x70] sm:$0xf]
      %v339 = vld [vmem:[%s301 + $0x74] sm:$0xf]
      %v340 = vld [vmem:[%s301 + $0x78] sm:$0xf]
      %v341 = vld [vmem:[%s301 + $0x7c] sm:$0xf]
      %v342 = vld [vmem:[%s1] sm:$0xf]
      %v343 = vld [vmem:[%s1 + $0x4] sm:$0xf]
      %v344 = vld [vmem:[%s1 + $0x8] sm:$0xf]
      %v345 = vld [vmem:[%s1 + $0xc] sm:$0xf]
      %v346 = vld [vmem:[%s1 + $0x10] sm:$0xf]
      %v347 = vld [vmem:[%s1 + $0x14] sm:$0xf]
      %v348 = vld [vmem:[%s1 + $0x18] sm:$0xf]
      %v349 = vld [vmem:[%s1 + $0x1c] sm:$0xf]
      %v350 = vld [vmem:[%s1 + $0x20] sm:$0xf]
      %v351 = vld [vmem:[%s1 + $0x24] sm:$0xf]
      %v352 = vld [vmem:[%s1 + $0x28] sm:$0xf]
      %v353 = vld [vmem:[%s1 + $0x2c] sm:$0xf]
      %v354 = vld [vmem:[%s1 + $0x30] sm:$0xf]
      %v355 = vld [vmem:[%s1 + $0x34] sm:$0xf]
      %v356 = vld [vmem:[%s1 + $0x38] sm:$0xf]
      %v357 = vld [vmem:[%s1 + $0x3c] sm:$0xf]
      %v390 = vunpack.c.l.b16 %v310
      %v391 = vunpack.c.l.b16 %v311
      %v392 = vunpack.c.l.b16 %v312
      %v393 = vunpack.c.l.b16 %v313
      %v394 = vunpack.c.l.b16 %v314
      %v395 = vunpack.c.l.b16 %v315
      %v396 = vunpack.c.l.b16 %v316
      %v397 = vunpack.c.l.b16 %v317
      %v398 = vunpack.c.l.b16 %v318
      %v399 = vunpack.c.l.b16 %v319
      %v400 = vunpack.c.l.b16 %v320
      %v401 = vunpack.c.l.b16 %v321
      %v402 = vunpack.c.l.b16 %v322
      %v403 = vunpack.c.l.b16 %v323
      %v404 = vunpack.c.l.b16 %v324
      %v405 = vunpack.c.l.b16 %v325
      %v406 = vunpack.c.l.b16 %v326
      %v407 = vunpack.c.l.b16 %v327
      %v408 = vunpack.c.l.b16 %v328
      %v409 = vunpack.c.l.b16 %v329
      %v410 = vunpack.c.l.b16 %v330
      %v411 = vunpack.c.l.b16 %v331
      %v412 = vunpack.c.l.b16 %v332
      %v413 = vunpack.c.l.b16 %v333
      %v414 = vunpack.c.l.b16 %v334
      %v415 = vunpack.c.l.b16 %v335
      %v416 = vunpack.c.l.b16 %v336
      %v417 = vunpack.c.l.b16 %v337
      %v418 = vunpack.c.l.b16 %v338
      %v419 = vunpack.c.l.b16 %v339
      %v420 = vunpack.c.l.b16 %v340
      %v421 = vunpack.c.l.b16 %v341
      %v422 = vpack.c.b16 %v391, %v390
      %v423 = vpack.c.b16 %v393, %v392
      %v424 = vpack.c.b16 %v395, %v394
      %v425 = vpack.c.b16 %v397, %v396
      %v426 = vpack.c.b16 %v399, %v398
      %v427 = vpack.c.b16 %v401, %v400
      %v428 = vpack.c.b16 %v403, %v402
      %v429 = vpack.c.b16 %v405, %v404
      %v430 = vpack.c.b16 %v407, %v406
      %v431 = vpack.c.b16 %v409, %v408
      %v432 = vpack.c.b16 %v411, %v410
      %v433 = vpack.c.b16 %v413, %v412
      %v434 = vpack.c.b16 %v415, %v414
      %v435 = vpack.c.b16 %v417, %v416
      %v436 = vpack.c.b16 %v419, %v418
      %v437 = vpack.c.b16 %v421, %v420
      %v470 = vunpack.c.l.b16 %v342
      %v471 = vunpack.c.l.b16 %v343
      %v472 = vunpack.c.l.b16 %v344
      %v473 = vunpack.c.l.b16 %v345
      %v474 = vunpack.c.l.b16 %v346
      %v475 = vunpack.c.l.b16 %v347
      %v476 = vunpack.c.l.b16 %v348
      %v477 = vunpack.c.l.b16 %v349
      %v478 = vunpack.c.l.b16 %v350
      %v479 = vunpack.c.l.b16 %v351
      %v480 = vunpack.c.l.b16 %v352
      %v481 = vunpack.c.l.b16 %v353
      %v482 = vunpack.c.l.b16 %v354
      %v483 = vunpack.c.l.b16 %v355
      %v484 = vunpack.c.l.b16 %v356
      %v485 = vunpack.c.l.b16 %v357
      %v486 = vpack.c.b16 %v471, %v470
      %v487 = vpack.c.b16 %v473, %v472
      %v488 = vpack.c.b16 %v475, %v474
      %v489 = vpack.c.b16 %v477, %v476
      %v490 = vpack.c.b16 %v479, %v478
      %v491 = vpack.c.b16 %v481, %v480
      %v492 = vpack.c.b16 %v483, %v482
      %v493 = vpack.c.b16 %v485, %v484
      %502 = vmatpush.bf16.msra.mxu0 %v493
      %503 = vmatpush.bf16.msra.mxu0 %v492
      %504 = vmatpush.bf16.msra.mxu0 %v491
      %505 = vmatpush.bf16.msra.mxu0 %v490
      %506 = vmatpush.bf16.msra.mxu0 %v489
      %507 = vmatpush.bf16.msra.mxu0 %v488
      %508 = vmatpush.bf16.msra.mxu0 %v487
      %509 = vmatpush.bf16.msra.mxu0 %v486
      %510 = vmatmul.bf16.gmra.mxu0 %v422
      %v511 = vpop.f32.mrf.mxu0
      %v512 = vadd.f32 0.0, %v511
      %v513 = vpop.f32.mrf.mxu0
      %v514 = vadd.f32 0.0, %v513
      %515 = vmatmul.bf16.gmra.mxu0 %v423
      %v516 = vpop.f32.mrf.mxu0
      %v517 = vadd.f32 0.0, %v516
      %v518 = vpop.f32.mrf.mxu0
      %v519 = vadd.f32 0.0, %v518
      %520 = vmatmul.bf16.gmra.mxu0 %v424
      %v521 = vpop.f32.mrf.mxu0
      %v522 = vadd.f32 0.0, %v521
      %v523 = vpop.f32.mrf.mxu0
      %v524 = vadd.f32 0.0, %v523
      %525 = vmatmul.bf16.gmra.mxu0 %v425
      %v526 = vpop.f32.mrf.mxu0
      %v527 = vadd.f32 0.0, %v526
      %v528 = vpop.f32.mrf.mxu0
      %v529 = vadd.f32 0.0, %v528
      %530 = vmatmul.bf16.gmra.mxu0 %v426
      %v531 = vpop.f32.mrf.mxu0
      %v532 = vadd.f32 0.0, %v531
      %v533 = vpop.f32.mrf.mxu0
      %v534 = vadd.f32 0.0, %v533
      %535 = vmatmul.bf16.gmra.mxu0 %v427
      %v536 = vpop.f32.mrf.mxu0
      %v537 = vadd.f32 0.0, %v536
      %v538 = vpop.f32.mrf.mxu0
      %v539 = vadd.f32 0.0, %v538
      %540 = vmatmul.bf16.gmra.mxu0 %v428
      %v541 = vpop.f32.mrf.mxu0
      %v542 = vadd.f32 0.0, %v541
      %v543 = vpop.f32.mrf.mxu0
      %v544 = vadd.f32 0.0, %v543
      %545 = vmatmul.bf16.gmra.mxu0 %v429
      %v546 = vpop.f32.mrf.mxu0
      %v547 = vadd.f32 0.0, %v546
      %v548 = vpop.f32.mrf.mxu0
      %v549 = vadd.f32 0.0, %v548
      %550 = vmatmul.bf16.gmra.mxu0 %v430
      %v551 = vpop.f32.mrf.mxu0
      %v552 = vadd.f32 0.0, %v551
      %v553 = vpop.f32.mrf.mxu0
      %v554 = vadd.f32 0.0, %v553
      %555 = vmatmul.bf16.gmra.mxu0 %v431
      %v556 = vpop.f32.mrf.mxu0
      %v557 = vadd.f32 0.0, %v556
      %v558 = vpop.f32.mrf.mxu0
      %v559 = vadd.f32 0.0, %v558
      %560 = vmatmul.bf16.gmra.mxu0 %v432
      %v561 = vpop.f32.mrf.mxu0
      %v562 = vadd.f32 0.0, %v561
      %v563 = vpop.f32.mrf.mxu0
      %v564 = vadd.f32 0.0, %v563
      %565 = vmatmul.bf16.gmra.mxu0 %v433
      %v566 = vpop.f32.mrf.mxu0
      %v567 = vadd.f32 0.0, %v566
      %v568 = vpop.f32.mrf.mxu0
      %v569 = vadd.f32 0.0, %v568
      %570 = vmatmul.bf16.gmra.mxu0 %v434
      %v571 = vpop.f32.mrf.mxu0
      %v572 = vadd.f32 0.0, %v571
      %v573 = vpop.f32.mrf.mxu0
      %v574 = vadd.f32 0.0, %v573
      %575 = vmatmul.bf16.gmra.mxu0 %v435
      %v576 = vpop.f32.mrf.mxu0
      %v577 = vadd.f32 0.0, %v576
      %v578 = vpop.f32.mrf.mxu0
      %v579 = vadd.f32 0.0, %v578
      %580 = vmatmul.bf16.gmra.mxu0 %v436
      %v581 = vpop.f32.mrf.mxu0
      %v582 = vadd.f32 0.0, %v581
      %v583 = vpop.f32.mrf.mxu0
      %v584 = vadd.f32 0.0, %v583
      %585 = vmatmul.bf16.gmra.mxu0 %v437
      %v586 = vpop.f32.mrf.mxu0
      %v587 = vadd.f32 0.0, %v586
      %v588 = vpop.f32.mrf.mxu0
      %v589 = vadd.f32 0.0, %v588
      %590 = vdwg.mxu0
      %vm591 = vcmp.ge.f32.partialorder %v512, 0.0
      %vm592 = vcmp.ge.f32.partialorder %v514, 0.0
      %vm593 = vcmp.ge.f32.partialorder %v517, 0.0
      %vm594 = vcmp.ge.f32.partialorder %v519, 0.0
      %vm595 = vcmp.ge.f32.partialorder %v522, 0.0
      %vm596 = vcmp.ge.f32.partialorder %v524, 0.0
      %vm597 = vcmp.ge.f32.partialorder %v527, 0.0
      %vm598 = vcmp.ge.f32.partialorder %v529, 0.0
      %vm599 = vcmp.ge.f32.partialorder %v532, 0.0
      %vm600 = vcmp.ge.f32.partialorder %v534, 0.0
      %vm601 = vcmp.ge.f32.partialorder %v537, 0.0
      %vm602 = vcmp.ge.f32.partialorder %v539, 0.0
      %vm603 = vcmp.ge.f32.partialorder %v542, 0.0
      %vm604 = vcmp.ge.f32.partialorder %v544, 0.0
      %vm605 = vcmp.ge.f32.partialorder %v547, 0.0
      %vm606 = vcmp.ge.f32.partialorder %v549, 0.0
      %vm607 = vcmp.ge.f32.partialorder %v552, 0.0
      %vm608 = vcmp.ge.f32.partialorder %v554, 0.0
      %vm609 = vcmp.ge.f32.partialorder %v557, 0.0
      %vm610 = vcmp.ge.f32.partialorder %v559, 0.0
      %vm611 = vcmp.ge.f32.partialorder %v562, 0.0
      %vm612 = vcmp.ge.f32.partialorder %v564, 0.0
      %vm613 = vcmp.ge.f32.partialorder %v567, 0.0
      %vm614 = vcmp.ge.f32.partialorder %v569, 0.0
      %vm615 = vcmp.ge.f32.partialorder %v572, 0.0
      %vm616 = vcmp.ge.f32.partialorder %v574, 0.0
      %vm617 = vcmp.ge.f32.partialorder %v577, 0.0
      %vm618 = vcmp.ge.f32.partialorder %v579, 0.0
      %vm619 = vcmp.ge.f32.partialorder %v582, 0.0
      %vm620 = vcmp.ge.f32.partialorder %v584, 0.0
      %vm621 = vcmp.ge.f32.partialorder %v587, 0.0
      %vm622 = vcmp.ge.f32.partialorder %v589, 0.0
      %v623 = vmul.f32 %v512, 0.01
      %v624 = vmul.f32 %v514, 0.01
      %v625 = vmul.f32 %v517, 0.01
      %v626 = vmul.f32 %v519, 0.01
      %v627 = vmul.f32 %v522, 0.01
      %v628 = vmul.f32 %v524, 0.01
      %v629 = vmul.f32 %v527, 0.01
      %v630 = vmul.f32 %v529, 0.01
      %v631 = vmul.f32 %v532, 0.01
      %v632 = vmul.f32 %v534, 0.01
      %v633 = vmul.f32 %v537, 0.01
      %v634 = vmul.f32 %v539, 0.01
      %v635 = vmul.f32 %v542, 0.01
      %v636 = vmul.f32 %v544, 0.01
      %v637 = vmul.f32 %v547, 0.01
      %v638 = vmul.f32 %v549, 0.01
      %v639 = vmul.f32 %v552, 0.01
      %v640 = vmul.f32 %v554, 0.01
      %v641 = vmul.f32 %v557, 0.01
      %v642 = vmul.f32 %v559, 0.01
      %v643 = vmul.f32 %v562, 0.01
      %v644 = vmul.f32 %v564, 0.01
      %v645 = vmul.f32 %v567, 0.01
      %v646 = vmul.f32 %v569, 0.01
      %v647 = vmul.f32 %v572, 0.01
      %v648 = vmul.f32 %v574, 0.01
      %v649 = vmul.f32 %v577, 0.01
      %v650 = vmul.f32 %v579, 0.01
      %v651 = vmul.f32 %v582, 0.01
      %v652 = vmul.f32 %v584, 0.01
      %v653 = vmul.f32 %v587, 0.01
      %v654 = vmul.f32 %v589, 0.01
      %v655 = vsel %vm591, %v512, %v623
      %v656 = vsel %vm592, %v514, %v624
      %v657 = vsel %vm593, %v517, %v625
      %v658 = vsel %vm594, %v519, %v626
      %v659 = vsel %vm595, %v522, %v627
      %v660 = vsel %vm596, %v524, %v628
      %v661 = vsel %vm597, %v527, %v629
      %v662 = vsel %vm598, %v529, %v630
      %v663 = vsel %vm599, %v532, %v631
      %v664 = vsel %vm600, %v534, %v632
      %v665 = vsel %vm601, %v537, %v633
      %v666 = vsel %vm602, %v539, %v634
      %v667 = vsel %vm603, %v542, %v635
      %v668 = vsel %vm604, %v544, %v636
      %v669 = vsel %vm605, %v547, %v637
      %v670 = vsel %vm606, %v549, %v638
      %v671 = vsel %vm607, %v552, %v639
      %v672 = vsel %vm608, %v554, %v640
      %v673 = vsel %vm609, %v557, %v641
      %v674 = vsel %vm610, %v559, %v642
      %v675 = vsel %vm611, %v562, %v643
      %v676 = vsel %vm612, %v564, %v644
      %v677 = vsel %vm613, %v567, %v645
      %v678 = vsel %vm614, %v569, %v646
      %v679 = vsel %vm615, %v572, %v647
      %v680 = vsel %vm616, %v574, %v648
      %v681 = vsel %vm617, %v577, %v649
      %v682 = vsel %vm618, %v579, %v650
      %v683 = vsel %vm619, %v582, %v651
      %v684 = vsel %vm620, %v584, %v652
      %v685 = vsel %vm621, %v587, %v653
      %v686 = vsel %vm622, %v589, %v654
      %v687 = vpack.c.bf16 %v656, %v655
      %v688 = vpack.c.bf16 %v658, %v657
      %v689 = vpack.c.bf16 %v660, %v659
      %v690 = vpack.c.bf16 %v662, %v661
      %v691 = vpack.c.bf16 %v664, %v663
      %v692 = vpack.c.bf16 %v666, %v665
      %v693 = vpack.c.bf16 %v668, %v667
      %v694 = vpack.c.bf16 %v670, %v669
      %v695 = vpack.c.bf16 %v672, %v671
      %v696 = vpack.c.bf16 %v674, %v673
      %v697 = vpack.c.bf16 %v676, %v675
      %v698 = vpack.c.bf16 %v678, %v677
      %v699 = vpack.c.bf16 %v680, %v679
      %v700 = vpack.c.bf16 %v682, %v681
      %v701 = vpack.c.bf16 %v684, %v683
      %v702 = vpack.c.bf16 %v686, %v685
      %v703 = vld [vmem:[%s2] sm:$0xf]
      %v704 = vld [vmem:[%s2 + $0x4] sm:$0xf]
      %v705 = vld [vmem:[%s2 + $0x8] sm:$0xf]
      %v706 = vld [vmem:[%s2 + $0xc] sm:$0xf]
      %v707 = vld [vmem:[%s2 + $0x10] sm:$0xf]
      %v708 = vld [vmem:[%s2 + $0x14] sm:$0xf]
      %v709 = vld [vmem:[%s2 + $0x18] sm:$0xf]
      %v710 = vld [vmem:[%s2 + $0x1c] sm:$0xf]
      %v711 = vld [vmem:[%s3] sm:$0xf]
      %v712 = vld [vmem:[%s3 + $0x4] sm:$0xf]
      %v713 = vld [vmem:[%s3 + $0x8] sm:$0xf]
      %v714 = vld [vmem:[%s3 + $0xc] sm:$0xf]
      %v715 = vld [vmem:[%s3 + $0x10] sm:$0xf]
      %v716 = vld [vmem:[%s3 + $0x14] sm:$0xf]
      %v717 = vld [vmem:[%s3 + $0x18] sm:$0xf]
      %v718 = vld [vmem:[%s3 + $0x1c] sm:$0xf]
      %v719 = vld [vmem:[%s3 + $0x20] sm:$0xf]
      %v720 = vld [vmem:[%s3 + $0x24] sm:$0xf]
      %v721 = vld [vmem:[%s3 + $0x28] sm:$0xf]
      %v722 = vld [vmem:[%s3 + $0x2c] sm:$0xf]
      %v723 = vld [vmem:[%s3 + $0x30] sm:$0xf]
      %v724 = vld [vmem:[%s3 + $0x34] sm:$0xf]
      %v725 = vld [vmem:[%s3 + $0x38] sm:$0xf]
      %v726 = vld [vmem:[%s3 + $0x3c] sm:$0xf]
      %v743 = vunpack.c.l.b16 %v711
      %v744 = vunpack.c.l.b16 %v712
      %v745 = vunpack.c.l.b16 %v713
      %v746 = vunpack.c.l.b16 %v714
      %v747 = vunpack.c.l.b16 %v715
      %v748 = vunpack.c.l.b16 %v716
      %v749 = vunpack.c.l.b16 %v717
      %v750 = vunpack.c.l.b16 %v718
      %v751 = vunpack.c.l.b16 %v719
      %v752 = vunpack.c.l.b16 %v720
      %v753 = vunpack.c.l.b16 %v721
      %v754 = vunpack.c.l.b16 %v722
      %v755 = vunpack.c.l.b16 %v723
      %v756 = vunpack.c.l.b16 %v724
      %v757 = vunpack.c.l.b16 %v725
      %v758 = vunpack.c.l.b16 %v726
      %v759 = vpack.c.b16 %v744, %v743
      %v760 = vpack.c.b16 %v746, %v745
      %v761 = vpack.c.b16 %v748, %v747
      %v762 = vpack.c.b16 %v750, %v749
      %v763 = vpack.c.b16 %v752, %v751
      %v764 = vpack.c.b16 %v754, %v753
      %v765 = vpack.c.b16 %v756, %v755
      %v766 = vpack.c.b16 %v758, %v757
      %775 = vmatpush.bf16.msra.mxu0 %v766
      %776 = vmatpush.bf16.msra.mxu0 %v765
      %777 = vmatpush.bf16.msra.mxu0 %v764
      %778 = vmatpush.bf16.msra.mxu0 %v763
      %779 = vmatpush.bf16.msra.mxu0 %v762
      %780 = vmatpush.bf16.msra.mxu0 %v761
      %781 = vmatpush.bf16.msra.mxu0 %v760
      %782 = vmatpush.bf16.msra.mxu0 %v759
      %783 = vmatmul.bf16.gmra.mxu0 %v422
      %v784 = vpop.f32.mrf.mxu0
      %v785 = vadd.f32 0.0, %v784
      %v786 = vpop.f32.mrf.mxu0
      %v787 = vadd.f32 0.0, %v786
      %788 = vmatmul.bf16.gmra.mxu0 %v423
      %v789 = vpop.f32.mrf.mxu0
      %v790 = vadd.f32 0.0, %v789
      %v791 = vpop.f32.mrf.mxu0
      %v792 = vadd.f32 0.0, %v791
      %793 = vmatmul.bf16.gmra.mxu0 %v424
      %v794 = vpop.f32.mrf.mxu0
      %v795 = vadd.f32 0.0, %v794
      %v796 = vpop.f32.mrf.mxu0
      %v797 = vadd.f32 0.0, %v796
      %798 = vmatmul.bf16.gmra.mxu0 %v425
      %v799 = vpop.f32.mrf.mxu0
      %v800 = vadd.f32 0.0, %v799
      %v801 = vpop.f32.mrf.mxu0
      %v802 = vadd.f32 0.0, %v801
      %803 = vmatmul.bf16.gmra.mxu0 %v426
      %v804 = vpop.f32.mrf.mxu0
      %v805 = vadd.f32 0.0, %v804
      %v806 = vpop.f32.mrf.mxu0
      %v807 = vadd.f32 0.0, %v806
      %808 = vmatmul.bf16.gmra.mxu0 %v427
      %v809 = vpop.f32.mrf.mxu0
      %v810 = vadd.f32 0.0, %v809
      %v811 = vpop.f32.mrf.mxu0
      %v812 = vadd.f32 0.0, %v811
      %813 = vmatmul.bf16.gmra.mxu0 %v428
      %v814 = vpop.f32.mrf.mxu0
      %v815 = vadd.f32 0.0, %v814
      %v816 = vpop.f32.mrf.mxu0
      %v817 = vadd.f32 0.0, %v816
      %818 = vmatmul.bf16.gmra.mxu0 %v429
      %v819 = vpop.f32.mrf.mxu0
      %v820 = vadd.f32 0.0, %v819
      %v821 = vpop.f32.mrf.mxu0
      %v822 = vadd.f32 0.0, %v821
      %823 = vmatmul.bf16.gmra.mxu0 %v430
      %v824 = vpop.f32.mrf.mxu0
      %v825 = vadd.f32 0.0, %v824
      %v826 = vpop.f32.mrf.mxu0
      %v827 = vadd.f32 0.0, %v826
      %828 = vmatmul.bf16.gmra.mxu0 %v431
      %v829 = vpop.f32.mrf.mxu0
      %v830 = vadd.f32 0.0, %v829
      %v831 = vpop.f32.mrf.mxu0
      %v832 = vadd.f32 0.0, %v831
      %833 = vmatmul.bf16.gmra.mxu0 %v432
      %v834 = vpop.f32.mrf.mxu0
      %v835 = vadd.f32 0.0, %v834
      %v836 = vpop.f32.mrf.mxu0
      %v837 = vadd.f32 0.0, %v836
      %838 = vmatmul.bf16.gmra.mxu0 %v433
      %v839 = vpop.f32.mrf.mxu0
      %v840 = vadd.f32 0.0, %v839
      %v841 = vpop.f32.mrf.mxu0
      %v842 = vadd.f32 0.0, %v841
      %843 = vmatmul.bf16.gmra.mxu0 %v434
      %v844 = vpop.f32.mrf.mxu0
      %v845 = vadd.f32 0.0, %v844
      %v846 = vpop.f32.mrf.mxu0
      %v847 = vadd.f32 0.0, %v846
      %848 = vmatmul.bf16.gmra.mxu0 %v435
      %v849 = vpop.f32.mrf.mxu0
      %v850 = vadd.f32 0.0, %v849
      %v851 = vpop.f32.mrf.mxu0
      %v852 = vadd.f32 0.0, %v851
      %853 = vmatmul.bf16.gmra.mxu0 %v436
      %v854 = vpop.f32.mrf.mxu0
      %v855 = vadd.f32 0.0, %v854
      %v856 = vpop.f32.mrf.mxu0
      %v857 = vadd.f32 0.0, %v856
      %858 = vmatmul.bf16.gmra.mxu0 %v437
      %v859 = vpop.f32.mrf.mxu0
      %v860 = vadd.f32 0.0, %v859
      %v861 = vpop.f32.mrf.mxu0
      %v862 = vadd.f32 0.0, %v861
      %863 = vdwg.mxu0
      %v872 = vunpack.c.l.b16 %v703
      %v873 = vunpack.c.l.b16 %v704
      %v874 = vunpack.c.l.b16 %v705
      %v875 = vunpack.c.l.b16 %v706
      %v876 = vunpack.c.l.b16 %v707
      %v877 = vunpack.c.l.b16 %v708
      %v878 = vunpack.c.l.b16 %v709
      %v879 = vunpack.c.l.b16 %v710
      %v880 = vpack.c.b16 %v873, %v872
      %v881 = vpack.c.b16 %v875, %v874
      %v882 = vpack.c.b16 %v877, %v876
      %v883 = vpack.c.b16 %v879, %v878
      %vm888 = vcmask 523264
      %v890 = vsel %vm888, %v687, 0
      %v893 = vsel %vm888, %v688, 0
      %v896 = vsel %vm888, %v689, 0
      %v899 = vsel %vm888, %v690, 0
      %v902 = vsel %vm888, %v691, 0
      %v905 = vsel %vm888, %v692, 0
      %v908 = vsel %vm888, %v693, 0
      %v911 = vsel %vm888, %v694, 0
      %v914 = vsel %vm888, %v695, 0
      %v917 = vsel %vm888, %v696, 0
      %v920 = vsel %vm888, %v697, 0
      %v923 = vsel %vm888, %v698, 0
      %v926 = vsel %vm888, %v699, 0
      %v929 = vsel %vm888, %v700, 0
      %v932 = vsel %vm888, %v701, 0
      %v935 = vsel %vm888, %v702, 0
      %937 = vmatpush.bf16.msra.mxu0 0
      %938 = vmatpush.bf16.msra.mxu0 0
      %939 = vmatpush.bf16.msra.mxu0 0
      %940 = vmatpush.bf16.msra.mxu0 0
      %941 = vmatpush.bf16.msra.mxu0 %v883
      %942 = vmatpush.bf16.msra.mxu0 %v882
      %943 = vmatpush.bf16.msra.mxu0 %v881
      %944 = vmatpush.bf16.msra.mxu0 %v880
      %945 = vmatmul.bf16.gmra.mxu0 %v890
      %v946 = vpop.f32.mrf.mxu0
      %v947 = vadd.f32 %v785, %v946
      %v948 = vpop.f32.mrf.mxu0
      %v949 = vadd.f32 %v787, %v948
      %950 = vmatmul.bf16.gmra.mxu0 %v893
      %v951 = vpop.f32.mrf.mxu0
      %v952 = vadd.f32 %v790, %v951
      %v953 = vpop.f32.mrf.mxu0
      %v954 = vadd.f32 %v792, %v953
      %955 = vmatmul.bf16.gmra.mxu0 %v896
      %v956 = vpop.f32.mrf.mxu0
      %v957 = vadd.f32 %v795, %v956
      %v958 = vpop.f32.mrf.mxu0
      %v959 = vadd.f32 %v797, %v958
      %960 = vmatmul.bf16.gmra.mxu0 %v899
      %v961 = vpop.f32.mrf.mxu0
      %v962 = vadd.f32 %v800, %v961
      %v963 = vpop.f32.mrf.mxu0
      %v964 = vadd.f32 %v802, %v963
      %965 = vmatmul.bf16.gmra.mxu0 %v902
      %v966 = vpop.f32.mrf.mxu0
      %v967 = vadd.f32 %v805, %v966
      %v968 = vpop.f32.mrf.mxu0
      %v969 = vadd.f32 %v807, %v968
      %970 = vmatmul.bf16.gmra.mxu0 %v905
      %v971 = vpop.f32.mrf.mxu0
      %v972 = vadd.f32 %v810, %v971
      %v973 = vpop.f32.mrf.mxu0
      %v974 = vadd.f32 %v812, %v973
      %975 = vmatmul.bf16.gmra.mxu0 %v908
      %v976 = vpop.f32.mrf.mxu0
      %v977 = vadd.f32 %v815, %v976
      %v978 = vpop.f32.mrf.mxu0
      %v979 = vadd.f32 %v817, %v978
      %980 = vmatmul.bf16.gmra.mxu0 %v911
      %v981 = vpop.f32.mrf.mxu0
      %v982 = vadd.f32 %v820, %v981
      %v983 = vpop.f32.mrf.mxu0
      %v984 = vadd.f32 %v822, %v983
      %985 = vmatmul.bf16.gmra.mxu0 %v914
      %v986 = vpop.f32.mrf.mxu0
      %v987 = vadd.f32 %v825, %v986
      %v988 = vpop.f32.mrf.mxu0
      %v989 = vadd.f32 %v827, %v988
      %990 = vmatmul.bf16.gmra.mxu0 %v917
      %v991 = vpop.f32.mrf.mxu0
      %v992 = vadd.f32 %v830, %v991
      %v993 = vpop.f32.mrf.mxu0
      %v994 = vadd.f32 %v832, %v993
      %995 = vmatmul.bf16.gmra.mxu0 %v920
      %v996 = vpop.f32.mrf.mxu0
      %v997 = vadd.f32 %v835, %v996
      %v998 = vpop.f32.mrf.mxu0
      %v999 = vadd.f32 %v837, %v998
      %1000 = vmatmul.bf16.gmra.mxu0 %v923
      %v1001 = vpop.f32.mrf.mxu0
      %v1002 = vadd.f32 %v840, %v1001
      %v1003 = vpop.f32.mrf.mxu0
      %v1004 = vadd.f32 %v842, %v1003
      %1005 = vmatmul.bf16.gmra.mxu0 %v926
      %v1006 = vpop.f32.mrf.mxu0
      %v1007 = vadd.f32 %v845, %v1006
      %v1008 = vpop.f32.mrf.mxu0
      %v1009 = vadd.f32 %v847, %v1008
      %1010 = vmatmul.bf16.gmra.mxu0 %v929
      %v1011 = vpop.f32.mrf.mxu0
      %v1012 = vadd.f32 %v850, %v1011
      %v1013 = vpop.f32.mrf.mxu0
      %v1014 = vadd.f32 %v852, %v1013
      %1015 = vmatmul.bf16.gmra.mxu0 %v932
      %v1016 = vpop.f32.mrf.mxu0
      %v1017 = vadd.f32 %v855, %v1016
      %v1018 = vpop.f32.mrf.mxu0
      %v1019 = vadd.f32 %v857, %v1018
      %1020 = vmatmul.bf16.gmra.mxu0 %v935
      %v1021 = vpop.f32.mrf.mxu0
      %v1022 = vadd.f32 %v860, %v1021
      %v1023 = vpop.f32.mrf.mxu0
      %v1024 = vadd.f32 %v862, %v1023
      %1025 = vdwg.mxu0
      %vm1026 = vcmp.ge.f32.partialorder %v947, 0.0
      %vm1027 = vcmp.ge.f32.partialorder %v949, 0.0
      %vm1028 = vcmp.ge.f32.partialorder %v952, 0.0
      %vm1029 = vcmp.ge.f32.partialorder %v954, 0.0
      %vm1030 = vcmp.ge.f32.partialorder %v957, 0.0
      %vm1031 = vcmp.ge.f32.partialorder %v959, 0.0
      %vm1032 = vcmp.ge.f32.partialorder %v962, 0.0
      %vm1033 = vcmp.ge.f32.partialorder %v964, 0.0
      %vm1034 = vcmp.ge.f32.partialorder %v967, 0.0
      %vm1035 = vcmp.ge.f32.partialorder %v969, 0.0
      %vm1036 = vcmp.ge.f32.partialorder %v972, 0.0
      %vm1037 = vcmp.ge.f32.partialorder %v974, 0.0
      %vm1038 = vcmp.ge.f32.partialorder %v977, 0.0
      %vm1039 = vcmp.ge.f32.partialorder %v979, 0.0
      %vm1040 = vcmp.ge.f32.partialorder %v982, 0.0
      %vm1041 = vcmp.ge.f32.partialorder %v984, 0.0
      %vm1042 = vcmp.ge.f32.partialorder %v987, 0.0
      %vm1043 = vcmp.ge.f32.partialorder %v989, 0.0
      %vm1044 = vcmp.ge.f32.partialorder %v992, 0.0
      %vm1045 = vcmp.ge.f32.partialorder %v994, 0.0
      %vm1046 = vcmp.ge.f32.partialorder %v997, 0.0
      %vm1047 = vcmp.ge.f32.partialorder %v999, 0.0
      %vm1048 = vcmp.ge.f32.partialorder %v1002, 0.0
      %vm1049 = vcmp.ge.f32.partialorder %v1004, 0.0
      %vm1050 = vcmp.ge.f32.partialorder %v1007, 0.0
      %vm1051 = vcmp.ge.f32.partialorder %v1009, 0.0
      %vm1052 = vcmp.ge.f32.partialorder %v1012, 0.0
      %vm1053 = vcmp.ge.f32.partialorder %v1014, 0.0
      %vm1054 = vcmp.ge.f32.partialorder %v1017, 0.0
      %vm1055 = vcmp.ge.f32.partialorder %v1019, 0.0
      %vm1056 = vcmp.ge.f32.partialorder %v1022, 0.0
      %vm1057 = vcmp.ge.f32.partialorder %v1024, 0.0
      %v1058 = vmul.f32 %v947, 0.01
      %v1059 = vmul.f32 %v949, 0.01
      %v1060 = vmul.f32 %v952, 0.01
      %v1061 = vmul.f32 %v954, 0.01
      %v1062 = vmul.f32 %v957, 0.01
      %v1063 = vmul.f32 %v959, 0.01
      %v1064 = vmul.f32 %v962, 0.01
      %v1065 = vmul.f32 %v964, 0.01
      %v1066 = vmul.f32 %v967, 0.01
      %v1067 = vmul.f32 %v969, 0.01
      %v1068 = vmul.f32 %v972, 0.01
      %v1069 = vmul.f32 %v974, 0.01
      %v1070 = vmul.f32 %v977, 0.01
      %v1071 = vmul.f32 %v979, 0.01
      %v1072 = vmul.f32 %v982, 0.01
      %v1073 = vmul.f32 %v984, 0.01
      %v1074 = vmul.f32 %v987, 0.01
      %v1075 = vmul.f32 %v989, 0.01
      %v1076 = vmul.f32 %v992, 0.01
      %v1077 = vmul.f32 %v994, 0.01
      %v1078 = vmul.f32 %v997, 0.01
      %v1079 = vmul.f32 %v999, 0.01
      %v1080 = vmul.f32 %v1002, 0.01
      %v1081 = vmul.f32 %v1004, 0.01
      %v1082 = vmul.f32 %v1007, 0.01
      %v1083 = vmul.f32 %v1009, 0.01
      %v1084 = vmul.f32 %v1012, 0.01
      %v1085 = vmul.f32 %v1014, 0.01
      %v1086 = vmul.f32 %v1017, 0.01
      %v1087 = vmul.f32 %v1019, 0.01
      %v1088 = vmul.f32 %v1022, 0.01
      %v1089 = vmul.f32 %v1024, 0.01
      %v1090 = vsel %vm1026, %v947, %v1058
      %v1091 = vsel %vm1027, %v949, %v1059
      %v1092 = vsel %vm1028, %v952, %v1060
      %v1093 = vsel %vm1029, %v954, %v1061
      %v1094 = vsel %vm1030, %v957, %v1062
      %v1095 = vsel %vm1031, %v959, %v1063
      %v1096 = vsel %vm1032, %v962, %v1064
      %v1097 = vsel %vm1033, %v964, %v1065
      %v1098 = vsel %vm1034, %v967, %v1066
      %v1099 = vsel %vm1035, %v969, %v1067
      %v1100 = vsel %vm1036, %v972, %v1068
      %v1101 = vsel %vm1037, %v974, %v1069
      %v1102 = vsel %vm1038, %v977, %v1070
      %v1103 = vsel %vm1039, %v979, %v1071
      %v1104 = vsel %vm1040, %v982, %v1072
      %v1105 = vsel %vm1041, %v984, %v1073
      %v1106 = vsel %vm1042, %v987, %v1074
      %v1107 = vsel %vm1043, %v989, %v1075
      %v1108 = vsel %vm1044, %v992, %v1076
      %v1109 = vsel %vm1045, %v994, %v1077
      %v1110 = vsel %vm1046, %v997, %v1078
      %v1111 = vsel %vm1047, %v999, %v1079
      %v1112 = vsel %vm1048, %v1002, %v1080
      %v1113 = vsel %vm1049, %v1004, %v1081
      %v1114 = vsel %vm1050, %v1007, %v1082
      %v1115 = vsel %vm1051, %v1009, %v1083
      %v1116 = vsel %vm1052, %v1012, %v1084
      %v1117 = vsel %vm1053, %v1014, %v1085
      %v1118 = vsel %vm1054, %v1017, %v1086
      %v1119 = vsel %vm1055, %v1019, %v1087
      %v1120 = vsel %vm1056, %v1022, %v1088
      %v1121 = vsel %vm1057, %v1024, %v1089
      %v1122 = vpack.c.bf16 %v1091, %v1090
      %v1123 = vpack.c.bf16 %v1093, %v1092
      %v1124 = vpack.c.bf16 %v1095, %v1094
      %v1125 = vpack.c.bf16 %v1097, %v1096
      %v1126 = vpack.c.bf16 %v1099, %v1098
      %v1127 = vpack.c.bf16 %v1101, %v1100
      %v1128 = vpack.c.bf16 %v1103, %v1102
      %v1129 = vpack.c.bf16 %v1105, %v1104
      %v1130 = vpack.c.bf16 %v1107, %v1106
      %v1131 = vpack.c.bf16 %v1109, %v1108
      %v1132 = vpack.c.bf16 %v1111, %v1110
      %v1133 = vpack.c.bf16 %v1113, %v1112
      %v1134 = vpack.c.bf16 %v1115, %v1114
      %v1135 = vpack.c.bf16 %v1117, %v1116
      %v1136 = vpack.c.bf16 %v1119, %v1118
      %v1137 = vpack.c.bf16 %v1121, %v1120
      %v1138 = vld [vmem:[%s4] sm:$0xf]
      %v1139 = vld [vmem:[%s4 + $0x4] sm:$0xf]
      %v1140 = vld [vmem:[%s4 + $0x8] sm:$0xf]
      %v1141 = vld [vmem:[%s4 + $0xc] sm:$0xf]
      %v1142 = vld [vmem:[%s4 + $0x10] sm:$0xf]
      %v1143 = vld [vmem:[%s4 + $0x14] sm:$0xf]
      %v1144 = vld [vmem:[%s4 + $0x18] sm:$0xf]
      %v1145 = vld [vmem:[%s4 + $0x1c] sm:$0xf]
      %v1146 = vld [vmem:[%s5] sm:$0xf]
      %v1147 = vld [vmem:[%s5 + $0x4] sm:$0xf]
      %v1148 = vld [vmem:[%s5 + $0x8] sm:$0xf]
      %v1149 = vld [vmem:[%s5 + $0xc] sm:$0xf]
      %v1150 = vld [vmem:[%s5 + $0x10] sm:$0xf]
      %v1151 = vld [vmem:[%s5 + $0x14] sm:$0xf]
      %v1152 = vld [vmem:[%s5 + $0x18] sm:$0xf]
      %v1153 = vld [vmem:[%s5 + $0x1c] sm:$0xf]
      %v1162 = vunpack.c.l.b16 %v1146
      %v1163 = vunpack.c.l.b16 %v1147
      %v1164 = vunpack.c.l.b16 %v1148
      %v1165 = vunpack.c.l.b16 %v1149
      %v1166 = vunpack.c.l.b16 %v1150
      %v1167 = vunpack.c.l.b16 %v1151
      %v1168 = vunpack.c.l.b16 %v1152
      %v1169 = vunpack.c.l.b16 %v1153
      %v1170 = vpack.c.b16 %v1163, %v1162
      %v1171 = vpack.c.b16 %v1165, %v1164
      %v1172 = vpack.c.b16 %v1167, %v1166
      %v1173 = vpack.c.b16 %v1169, %v1168
      %1178 = vmatpush.bf16.msra.mxu0 0
      %1179 = vmatpush.bf16.msra.mxu0 0
      %1180 = vmatpush.bf16.msra.mxu0 0
      %1181 = vmatpush.bf16.msra.mxu0 0
      %1182 = vmatpush.bf16.msra.mxu0 %v1173
      %1183 = vmatpush.bf16.msra.mxu0 %v1172
      %1184 = vmatpush.bf16.msra.mxu0 %v1171
      %1185 = vmatpush.bf16.msra.mxu0 %v1170
      %1186 = vmatmul.bf16.gmra.mxu0 %v890
      %v1187 = vpop.f32.mrf.mxu0
      %v1188 = vadd.f32 0.0, %v1187
      %v1189 = vpop.f32.mrf.mxu0
      %v1190 = vadd.f32 0.0, %v1189
      %1191 = vmatmul.bf16.gmra.mxu0 %v893
      %v1192 = vpop.f32.mrf.mxu0
      %v1193 = vadd.f32 0.0, %v1192
      %v1194 = vpop.f32.mrf.mxu0
      %v1195 = vadd.f32 0.0, %v1194
      %1196 = vmatmul.bf16.gmra.mxu0 %v896
      %v1197 = vpop.f32.mrf.mxu0
      %v1198 = vadd.f32 0.0, %v1197
      %v1199 = vpop.f32.mrf.mxu0
      %v1200 = vadd.f32 0.0, %v1199
      %1201 = vmatmul.bf16.gmra.mxu0 %v899
      %v1202 = vpop.f32.mrf.mxu0
      %v1203 = vadd.f32 0.0, %v1202
      %v1204 = vpop.f32.mrf.mxu0
      %v1205 = vadd.f32 0.0, %v1204
      %1206 = vmatmul.bf16.gmra.mxu0 %v902
      %v1207 = vpop.f32.mrf.mxu0
      %v1208 = vadd.f32 0.0, %v1207
      %v1209 = vpop.f32.mrf.mxu0
      %v1210 = vadd.f32 0.0, %v1209
      %1211 = vmatmul.bf16.gmra.mxu0 %v905
      %v1212 = vpop.f32.mrf.mxu0
      %v1213 = vadd.f32 0.0, %v1212
      %v1214 = vpop.f32.mrf.mxu0
      %v1215 = vadd.f32 0.0, %v1214
      %1216 = vmatmul.bf16.gmra.mxu0 %v908
      %v1217 = vpop.f32.mrf.mxu0
      %v1218 = vadd.f32 0.0, %v1217
      %v1219 = vpop.f32.mrf.mxu0
      %v1220 = vadd.f32 0.0, %v1219
      %1221 = vmatmul.bf16.gmra.mxu0 %v911
      %v1222 = vpop.f32.mrf.mxu0
      %v1223 = vadd.f32 0.0, %v1222
      %v1224 = vpop.f32.mrf.mxu0
      %v1225 = vadd.f32 0.0, %v1224
      %1226 = vmatmul.bf16.gmra.mxu0 %v914
      %v1227 = vpop.f32.mrf.mxu0
      %v1228 = vadd.f32 0.0, %v1227
      %v1229 = vpop.f32.mrf.mxu0
      %v1230 = vadd.f32 0.0, %v1229
      %1231 = vmatmul.bf16.gmra.mxu0 %v917
      %v1232 = vpop.f32.mrf.mxu0
      %v1233 = vadd.f32 0.0, %v1232
      %v1234 = vpop.f32.mrf.mxu0
      %v1235 = vadd.f32 0.0, %v1234
      %1236 = vmatmul.bf16.gmra.mxu0 %v920
      %v1237 = vpop.f32.mrf.mxu0
      %v1238 = vadd.f32 0.0, %v1237
      %v1239 = vpop.f32.mrf.mxu0
      %v1240 = vadd.f32 0.0, %v1239
      %1241 = vmatmul.bf16.gmra.mxu0 %v923
      %v1242 = vpop.f32.mrf.mxu0
      %v1243 = vadd.f32 0.0, %v1242
      %v1244 = vpop.f32.mrf.mxu0
      %v1245 = vadd.f32 0.0, %v1244
      %1246 = vmatmul.bf16.gmra.mxu0 %v926
      %v1247 = vpop.f32.mrf.mxu0
      %v1248 = vadd.f32 0.0, %v1247
      %v1249 = vpop.f32.mrf.mxu0
      %v1250 = vadd.f32 0.0, %v1249
      %1251 = vmatmul.bf16.gmra.mxu0 %v929
      %v1252 = vpop.f32.mrf.mxu0
      %v1253 = vadd.f32 0.0, %v1252
      %v1254 = vpop.f32.mrf.mxu0
      %v1255 = vadd.f32 0.0, %v1254
      %1256 = vmatmul.bf16.gmra.mxu0 %v932
      %v1257 = vpop.f32.mrf.mxu0
      %v1258 = vadd.f32 0.0, %v1257
      %v1259 = vpop.f32.mrf.mxu0
      %v1260 = vadd.f32 0.0, %v1259
      %1261 = vmatmul.bf16.gmra.mxu0 %v935
      %v1262 = vpop.f32.mrf.mxu0
      %v1263 = vadd.f32 0.0, %v1262
      %v1264 = vpop.f32.mrf.mxu0
      %v1265 = vadd.f32 0.0, %v1264
      %1266 = vdwg.mxu0
      %v1275 = vunpack.c.l.b16 %v1138
      %v1276 = vunpack.c.l.b16 %v1139
      %v1277 = vunpack.c.l.b16 %v1140
      %v1278 = vunpack.c.l.b16 %v1141
      %v1279 = vunpack.c.l.b16 %v1142
      %v1280 = vunpack.c.l.b16 %v1143
      %v1281 = vunpack.c.l.b16 %v1144
      %v1282 = vunpack.c.l.b16 %v1145
      %v1283 = vpack.c.b16 %v1276, %v1275
      %v1284 = vpack.c.b16 %v1278, %v1277
      %v1285 = vpack.c.b16 %v1280, %v1279
      %v1286 = vpack.c.b16 %v1282, %v1281
      %v1292 = vsel %vm888, %v1122, 0
      %v1295 = vsel %vm888, %v1123, 0
      %v1298 = vsel %vm888, %v1124, 0
      %v1301 = vsel %vm888, %v1125, 0
      %v1304 = vsel %vm888, %v1126, 0
      %v1307 = vsel %vm888, %v1127, 0
      %v1310 = vsel %vm888, %v1128, 0
      %v1313 = vsel %vm888, %v1129, 0
      %v1316 = vsel %vm888, %v1130, 0
      %v1319 = vsel %vm888, %v1131, 0
      %v1322 = vsel %vm888, %v1132, 0
      %v1325 = vsel %vm888, %v1133, 0
      %v1328 = vsel %vm888, %v1134, 0
      %v1331 = vsel %vm888, %v1135, 0
      %v1334 = vsel %vm888, %v1136, 0
      %v1337 = vsel %vm888, %v1137, 0
      %1339 = vmatpush.bf16.msra.mxu0 0
      %1340 = vmatpush.bf16.msra.mxu0 0
      %1341 = vmatpush.bf16.msra.mxu0 0
      %1342 = vmatpush.bf16.msra.mxu0 0
      %1343 = vmatpush.bf16.msra.mxu0 %v1286
      %1344 = vmatpush.bf16.msra.mxu0 %v1285
      %1345 = vmatpush.bf16.msra.mxu0 %v1284
      %1346 = vmatpush.bf16.msra.mxu0 %v1283
      %1347 = vmatmul.bf16.gmra.mxu0 %v1292
      %v1348 = vpop.f32.mrf.mxu0
      %v1349 = vadd.f32 %v1188, %v1348
      %v1350 = vpop.f32.mrf.mxu0
      %v1351 = vadd.f32 %v1190, %v1350
      %1352 = vmatmul.bf16.gmra.mxu0 %v1295
      %v1353 = vpop.f32.mrf.mxu0
      %v1354 = vadd.f32 %v1193, %v1353
      %v1355 = vpop.f32.mrf.mxu0
      %v1356 = vadd.f32 %v1195, %v1355
      %1357 = vmatmul.bf16.gmra.mxu0 %v1298
      %v1358 = vpop.f32.mrf.mxu0
      %v1359 = vadd.f32 %v1198, %v1358
      %v1360 = vpop.f32.mrf.mxu0
      %v1361 = vadd.f32 %v1200, %v1360
      %1362 = vmatmul.bf16.gmra.mxu0 %v1301
      %v1363 = vpop.f32.mrf.mxu0
      %v1364 = vadd.f32 %v1203, %v1363
      %v1365 = vpop.f32.mrf.mxu0
      %v1366 = vadd.f32 %v1205, %v1365
      %1367 = vmatmul.bf16.gmra.mxu0 %v1304
      %v1368 = vpop.f32.mrf.mxu0
      %v1369 = vadd.f32 %v1208, %v1368
      %v1370 = vpop.f32.mrf.mxu0
      %v1371 = vadd.f32 %v1210, %v1370
      %1372 = vmatmul.bf16.gmra.mxu0 %v1307
      %v1373 = vpop.f32.mrf.mxu0
      %v1374 = vadd.f32 %v1213, %v1373
      %v1375 = vpop.f32.mrf.mxu0
      %v1376 = vadd.f32 %v1215, %v1375
      %1377 = vmatmul.bf16.gmra.mxu0 %v1310
      %v1378 = vpop.f32.mrf.mxu0
      %v1379 = vadd.f32 %v1218, %v1378
      %v1380 = vpop.f32.mrf.mxu0
      %v1381 = vadd.f32 %v1220, %v1380
      %1382 = vmatmul.bf16.gmra.mxu0 %v1313
      %v1383 = vpop.f32.mrf.mxu0
      %v1384 = vadd.f32 %v1223, %v1383
      %v1385 = vpop.f32.mrf.mxu0
      %v1386 = vadd.f32 %v1225, %v1385
      %1387 = vmatmul.bf16.gmra.mxu0 %v1316
      %v1388 = vpop.f32.mrf.mxu0
      %v1389 = vadd.f32 %v1228, %v1388
      %v1390 = vpop.f32.mrf.mxu0
      %v1391 = vadd.f32 %v1230, %v1390
      %1392 = vmatmul.bf16.gmra.mxu0 %v1319
      %v1393 = vpop.f32.mrf.mxu0
      %v1394 = vadd.f32 %v1233, %v1393
      %v1395 = vpop.f32.mrf.mxu0
      %v1396 = vadd.f32 %v1235, %v1395
      %1397 = vmatmul.bf16.gmra.mxu0 %v1322
      %v1398 = vpop.f32.mrf.mxu0
      %v1399 = vadd.f32 %v1238, %v1398
      %v1400 = vpop.f32.mrf.mxu0
      %v1401 = vadd.f32 %v1240, %v1400
      %1402 = vmatmul.bf16.gmra.mxu0 %v1325
      %v1403 = vpop.f32.mrf.mxu0
      %v1404 = vadd.f32 %v1243, %v1403
      %v1405 = vpop.f32.mrf.mxu0
      %v1406 = vadd.f32 %v1245, %v1405
      %1407 = vmatmul.bf16.gmra.mxu0 %v1328
      %v1408 = vpop.f32.mrf.mxu0
      %v1409 = vadd.f32 %v1248, %v1408
      %v1410 = vpop.f32.mrf.mxu0
      %v1411 = vadd.f32 %v1250, %v1410
      %1412 = vmatmul.bf16.gmra.mxu0 %v1331
      %v1413 = vpop.f32.mrf.mxu0
      %v1414 = vadd.f32 %v1253, %v1413
      %v1415 = vpop.f32.mrf.mxu0
      %v1416 = vadd.f32 %v1255, %v1415
      %1417 = vmatmul.bf16.gmra.mxu0 %v1334
      %v1418 = vpop.f32.mrf.mxu0
      %v1419 = vadd.f32 %v1258, %v1418
      %v1420 = vpop.f32.mrf.mxu0
      %v1421 = vadd.f32 %v1260, %v1420
      %1422 = vmatmul.bf16.gmra.mxu0 %v1337
      %v1423 = vpop.f32.mrf.mxu0
      %v1424 = vadd.f32 %v1263, %v1423
      %v1425 = vpop.f32.mrf.mxu0
      %v1426 = vadd.f32 %v1265, %v1425
      %1427 = vdwg.mxu0
      %v1428 = vld [vmem:[%s6] sm:$0xf]
      %v1429 = vld [vmem:[%s6 + $0x4] sm:$0xf]
      %v1430 = vld [vmem:[%s6 + $0x8] sm:$0xf]
      %v1431 = vld [vmem:[%s6 + $0xc] sm:$0xf]
      %v1432 = vld [vmem:[%s6 + $0x10] sm:$0xf]
      %v1433 = vld [vmem:[%s6 + $0x14] sm:$0xf]
      %v1434 = vld [vmem:[%s6 + $0x18] sm:$0xf]
      %v1435 = vld [vmem:[%s6 + $0x1c] sm:$0xf]
      %v1436 = vld [vmem:[%s6 + $0x20] sm:$0xf]
      %v1437 = vld [vmem:[%s6 + $0x24] sm:$0xf]
      %v1438 = vld [vmem:[%s6 + $0x28] sm:$0xf]
      %v1439 = vld [vmem:[%s6 + $0x2c] sm:$0xf]
      %v1440 = vld [vmem:[%s6 + $0x30] sm:$0xf]
      %v1441 = vld [vmem:[%s6 + $0x34] sm:$0xf]
      %v1442 = vld [vmem:[%s6 + $0x38] sm:$0xf]
      %v1443 = vld [vmem:[%s6 + $0x3c] sm:$0xf]
      %v1460 = vunpack.c.l.b16 %v1428
      %v1461 = vunpack.c.l.b16 %v1429
      %v1462 = vunpack.c.l.b16 %v1430
      %v1463 = vunpack.c.l.b16 %v1431
      %v1464 = vunpack.c.l.b16 %v1432
      %v1465 = vunpack.c.l.b16 %v1433
      %v1466 = vunpack.c.l.b16 %v1434
      %v1467 = vunpack.c.l.b16 %v1435
      %v1468 = vunpack.c.l.b16 %v1436
      %v1469 = vunpack.c.l.b16 %v1437
      %v1470 = vunpack.c.l.b16 %v1438
      %v1471 = vunpack.c.l.b16 %v1439
      %v1472 = vunpack.c.l.b16 %v1440
      %v1473 = vunpack.c.l.b16 %v1441
      %v1474 = vunpack.c.l.b16 %v1442
      %v1475 = vunpack.c.l.b16 %v1443
      %v1476 = vpack.c.b16 %v1461, %v1460
      %v1477 = vpack.c.b16 %v1463, %v1462
      %v1478 = vpack.c.b16 %v1465, %v1464
      %v1479 = vpack.c.b16 %v1467, %v1466
      %v1480 = vpack.c.b16 %v1469, %v1468
      %v1481 = vpack.c.b16 %v1471, %v1470
      %v1482 = vpack.c.b16 %v1473, %v1472
      %v1483 = vpack.c.b16 %v1475, %v1474
      %1492 = vmatpush.bf16.msra.mxu0 %v1483
      %1493 = vmatpush.bf16.msra.mxu0 %v1482
      %1494 = vmatpush.bf16.msra.mxu0 %v1481
      %1495 = vmatpush.bf16.msra.mxu0 %v1480
      %1496 = vmatpush.bf16.msra.mxu0 %v1479
      %1497 = vmatpush.bf16.msra.mxu0 %v1478
      %1498 = vmatpush.bf16.msra.mxu0 %v1477
      %1499 = vmatpush.bf16.msra.mxu0 %v1476
      %1500 = vmatmul.bf16.gmra.mxu0 %v422
      %v1501 = vpop.f32.mrf.mxu0
      %v1502 = vadd.f32 0.0, %v1501
      %v1503 = vpop.f32.mrf.mxu0
      %v1504 = vadd.f32 0.0, %v1503
      %1505 = vmatmul.bf16.gmra.mxu0 %v423
      %v1506 = vpop.f32.mrf.mxu0
      %v1507 = vadd.f32 0.0, %v1506
      %v1508 = vpop.f32.mrf.mxu0
      %v1509 = vadd.f32 0.0, %v1508
      %1510 = vmatmul.bf16.gmra.mxu0 %v424
      %v1511 = vpop.f32.mrf.mxu0
      %v1512 = vadd.f32 0.0, %v1511
      %v1513 = vpop.f32.mrf.mxu0
      %v1514 = vadd.f32 0.0, %v1513
      %1515 = vmatmul.bf16.gmra.mxu0 %v425
      %v1516 = vpop.f32.mrf.mxu0
      %v1517 = vadd.f32 0.0, %v1516
      %v1518 = vpop.f32.mrf.mxu0
      %v1519 = vadd.f32 0.0, %v1518
      %1520 = vmatmul.bf16.gmra.mxu0 %v426
      %v1521 = vpop.f32.mrf.mxu0
      %v1522 = vadd.f32 0.0, %v1521
      %v1523 = vpop.f32.mrf.mxu0
      %v1524 = vadd.f32 0.0, %v1523
      %1525 = vmatmul.bf16.gmra.mxu0 %v427
      %v1526 = vpop.f32.mrf.mxu0
      %v1527 = vadd.f32 0.0, %v1526
      %v1528 = vpop.f32.mrf.mxu0
      %v1529 = vadd.f32 0.0, %v1528
      %1530 = vmatmul.bf16.gmra.mxu0 %v428
      %v1531 = vpop.f32.mrf.mxu0
      %v1532 = vadd.f32 0.0, %v1531
      %v1533 = vpop.f32.mrf.mxu0
      %v1534 = vadd.f32 0.0, %v1533
      %1535 = vmatmul.bf16.gmra.mxu0 %v429
      %v1536 = vpop.f32.mrf.mxu0
      %v1537 = vadd.f32 0.0, %v1536
      %v1538 = vpop.f32.mrf.mxu0
      %v1539 = vadd.f32 0.0, %v1538
      %1540 = vmatmul.bf16.gmra.mxu0 %v430
      %v1541 = vpop.f32.mrf.mxu0
      %v1542 = vadd.f32 0.0, %v1541
      %v1543 = vpop.f32.mrf.mxu0
      %v1544 = vadd.f32 0.0, %v1543
      %1545 = vmatmul.bf16.gmra.mxu0 %v431
      %v1546 = vpop.f32.mrf.mxu0
      %v1547 = vadd.f32 0.0, %v1546
      %v1548 = vpop.f32.mrf.mxu0
      %v1549 = vadd.f32 0.0, %v1548
      %1550 = vmatmul.bf16.gmra.mxu0 %v432
      %v1551 = vpop.f32.mrf.mxu0
      %v1552 = vadd.f32 0.0, %v1551
      %v1553 = vpop.f32.mrf.mxu0
      %v1554 = vadd.f32 0.0, %v1553
      %1555 = vmatmul.bf16.gmra.mxu0 %v433
      %v1556 = vpop.f32.mrf.mxu0
      %v1557 = vadd.f32 0.0, %v1556
      %v1558 = vpop.f32.mrf.mxu0
      %v1559 = vadd.f32 0.0, %v1558
      %1560 = vmatmul.bf16.gmra.mxu0 %v434
      %v1561 = vpop.f32.mrf.mxu0
      %v1562 = vadd.f32 0.0, %v1561
      %v1563 = vpop.f32.mrf.mxu0
      %v1564 = vadd.f32 0.0, %v1563
      %1565 = vmatmul.bf16.gmra.mxu0 %v435
      %v1566 = vpop.f32.mrf.mxu0
      %v1567 = vadd.f32 0.0, %v1566
      %v1568 = vpop.f32.mrf.mxu0
      %v1569 = vadd.f32 0.0, %v1568
      %1570 = vmatmul.bf16.gmra.mxu0 %v436
      %v1571 = vpop.f32.mrf.mxu0
      %v1572 = vadd.f32 0.0, %v1571
      %v1573 = vpop.f32.mrf.mxu0
      %v1574 = vadd.f32 0.0, %v1573
      %1575 = vmatmul.bf16.gmra.mxu0 %v437
      %v1576 = vpop.f32.mrf.mxu0
      %v1577 = vadd.f32 0.0, %v1576
      %v1578 = vpop.f32.mrf.mxu0
      %v1579 = vadd.f32 0.0, %v1578
      %1580 = vdwg.mxu0
      %v1581 = vadd.f32 %v1349, %v1502
      %v1582 = vadd.f32 %v1351, %v1504
      %v1583 = vadd.f32 %v1354, %v1507
      %v1584 = vadd.f32 %v1356, %v1509
      %v1585 = vadd.f32 %v1359, %v1512
      %v1586 = vadd.f32 %v1361, %v1514
      %v1587 = vadd.f32 %v1364, %v1517
      %v1588 = vadd.f32 %v1366, %v1519
      %v1589 = vadd.f32 %v1369, %v1522
      %v1590 = vadd.f32 %v1371, %v1524
      %v1591 = vadd.f32 %v1374, %v1527
      %v1592 = vadd.f32 %v1376, %v1529
      %v1593 = vadd.f32 %v1379, %v1532
      %v1594 = vadd.f32 %v1381, %v1534
      %v1595 = vadd.f32 %v1384, %v1537
      %v1596 = vadd.f32 %v1386, %v1539
      %v1597 = vadd.f32 %v1389, %v1542
      %v1598 = vadd.f32 %v1391, %v1544
      %v1599 = vadd.f32 %v1394, %v1547
      %v1600 = vadd.f32 %v1396, %v1549
      %v1601 = vadd.f32 %v1399, %v1552
      %v1602 = vadd.f32 %v1401, %v1554
      %v1603 = vadd.f32 %v1404, %v1557
      %v1604 = vadd.f32 %v1406, %v1559
      %v1605 = vadd.f32 %v1409, %v1562
      %v1606 = vadd.f32 %v1411, %v1564
      %v1607 = vadd.f32 %v1414, %v1567
      %v1608 = vadd.f32 %v1416, %v1569
      %v1609 = vadd.f32 %v1419, %v1572
      %v1610 = vadd.f32 %v1421, %v1574
      %v1611 = vadd.f32 %v1424, %v1577
      %v1612 = vadd.f32 %v1426, %v1579
      %v1613 = vlaneseq
      %v1614 = vand.u32 %v1613, 127
      %vm1615 = vcmp.lt.s32.totalorder %v1614, 0
      %vm1616 = vcmp.ge.s32.totalorder %v1614, 0
      %vm1617 = vcmp.lt.s32.totalorder %v1614, 1
      %vm1618 = vmand %vm1616, %vm1617
      %vm1619 = vmor %vm1615, %vm1618
      %vm1620 = vcmp.ge.s32.totalorder %v1614, 1
      %vm1621 = vcmp.lt.s32.totalorder %v1614, 4
      %vm1622 = vmand %vm1620, %vm1621
      %vm1623 = vmor %vm1615, %vm1622
      %vm1624 = vcmp.ge.s32.totalorder %v1614, 4
      %vm1625 = vcmp.lt.s32.totalorder %v1614, 5
      %vm1626 = vmand %vm1624, %vm1625
      %vm1627 = vmor %vm1619, %vm1626
      %vm1628 = vcmp.ge.s32.totalorder %v1614, 5
      %vm1629 = vcmp.lt.s32.totalorder %v1614, 8
      %vm1630 = vmand %vm1628, %vm1629
      %vm1631 = vmor %vm1623, %vm1630
      %vm1632 = vcmp.ge.s32.totalorder %v1614, 8
      %vm1633 = vcmp.lt.s32.totalorder %v1614, 12
      %vm1634 = vmand %vm1632, %vm1633
      %vm1635 = vmor %vm1631, %vm1634
      %v1636 = vsel %vm1635, 1, 0
      %vm1637 = vcmp.eq.s32.totalorder %v1636, 1
      %v1638 = vsel %vm1637, %v1581, -inf
      %v1639 = vsel %vm1637, %v1582, -inf
      %v1640 = vsel %vm1637, %v1583, -inf
      %v1641 = vsel %vm1637, %v1584, -inf
      %v1642 = vsel %vm1637, %v1585, -inf
      %v1643 = vsel %vm1637, %v1586, -inf
      %v1644 = vsel %vm1637, %v1587, -inf
      %v1645 = vsel %vm1637, %v1588, -inf
      %v1646 = vsel %vm1637, %v1589, -inf
      %v1647 = vsel %vm1637, %v1590, -inf
      %v1648 = vsel %vm1637, %v1591, -inf
      %v1649 = vsel %vm1637, %v1592, -inf
      %v1650 = vsel %vm1637, %v1593, -inf
      %v1651 = vsel %vm1637, %v1594, -inf
      %v1652 = vsel %vm1637, %v1595, -inf
      %v1653 = vsel %vm1637, %v1596, -inf
      %v1654 = vsel %vm1637, %v1597, -inf
      %v1655 = vsel %vm1637, %v1598, -inf
      %v1656 = vsel %vm1637, %v1599, -inf
      %v1657 = vsel %vm1637, %v1600, -inf
      %v1658 = vsel %vm1637, %v1601, -inf
      %v1659 = vsel %vm1637, %v1602, -inf
      %v1660 = vsel %vm1637, %v1603, -inf
      %v1661 = vsel %vm1637, %v1604, -inf
      %v1662 = vsel %vm1637, %v1605, -inf
      %v1663 = vsel %vm1637, %v1606, -inf
      %v1664 = vsel %vm1637, %v1607, -inf
      %v1665 = vsel %vm1637, %v1608, -inf
      %v1666 = vsel %vm1637, %v1609, -inf
      %v1667 = vsel %vm1637, %v1610, -inf
      %v1668 = vsel %vm1637, %v1611, -inf
      %v1669 = vsel %vm1637, %v1612, -inf
      %1670 = vmax.xlane.f32.xlu0 %v1638
      %v1671 = vpop.xlane.xlu0 %1670
      %1672 = vmax.xlane.f32.xlu0 %v1639
      %v1673 = vpop.xlane.xlu0 %1672
      %1674 = vmax.xlane.f32.xlu0 %v1640
      %v1675 = vpop.xlane.xlu0 %1674
      %1676 = vmax.xlane.f32.xlu0 %v1641
      %v1677 = vpop.xlane.xlu0 %1676
      %1678 = vmax.xlane.f32.xlu0 %v1642
      %v1679 = vpop.xlane.xlu0 %1678
      %1680 = vmax.xlane.f32.xlu0 %v1643
      %v1681 = vpop.xlane.xlu0 %1680
      %1682 = vmax.xlane.f32.xlu0 %v1644
      %v1683 = vpop.xlane.xlu0 %1682
      %1684 = vmax.xlane.f32.xlu0 %v1645
      %v1685 = vpop.xlane.xlu0 %1684
      %1686 = vmax.xlane.f32.xlu0 %v1646
      %v1687 = vpop.xlane.xlu0 %1686
      %1688 = vmax.xlane.f32.xlu0 %v1647
      %v1689 = vpop.xlane.xlu0 %1688
      %1690 = vmax.xlane.f32.xlu0 %v1648
      %v1691 = vpop.xlane.xlu0 %1690
      %1692 = vmax.xlane.f32.xlu0 %v1649
      %v1693 = vpop.xlane.xlu0 %1692
      %1694 = vmax.xlane.f32.xlu0 %v1650
      %v1695 = vpop.xlane.xlu0 %1694
      %1696 = vmax.xlane.f32.xlu0 %v1651
      %v1697 = vpop.xlane.xlu0 %1696
      %1698 = vmax.xlane.f32.xlu0 %v1652
      %v1699 = vpop.xlane.xlu0 %1698
      %1700 = vmax.xlane.f32.xlu0 %v1653
      %v1701 = vpop.xlane.xlu0 %1700
      %1702 = vmax.xlane.f32.xlu0 %v1654
      %v1703 = vpop.xlane.xlu0 %1702
      %1704 = vmax.xlane.f32.xlu0 %v1655
      %v1705 = vpop.xlane.xlu0 %1704
      %1706 = vmax.xlane.f32.xlu0 %v1656
      %v1707 = vpop.xlane.xlu0 %1706
      %1708 = vmax.xlane.f32.xlu0 %v1657
      %v1709 = vpop.xlane.xlu0 %1708
      %1710 = vmax.xlane.f32.xlu0 %v1658
      %v1711 = vpop.xlane.xlu0 %1710
      %1712 = vmax.xlane.f32.xlu0 %v1659
      %v1713 = vpop.xlane.xlu0 %1712
      %1714 = vmax.xlane.f32.xlu0 %v1660
      %v1715 = vpop.xlane.xlu0 %1714
      %1716 = vmax.xlane.f32.xlu0 %v1661
      %v1717 = vpop.xlane.xlu0 %1716
      %1718 = vmax.xlane.f32.xlu0 %v1662
      %v1719 = vpop.xlane.xlu0 %1718
      %1720 = vmax.xlane.f32.xlu0 %v1663
      %v1721 = vpop.xlane.xlu0 %1720
      %1722 = vmax.xlane.f32.xlu0 %v1664
      %v1723 = vpop.xlane.xlu0 %1722
      %1724 = vmax.xlane.f32.xlu0 %v1665
      %v1725 = vpop.xlane.xlu0 %1724
      %1726 = vmax.xlane.f32.xlu0 %v1666
      %v1727 = vpop.xlane.xlu0 %1726
      %1728 = vmax.xlane.f32.xlu0 %v1667
      %v1729 = vpop.xlane.xlu0 %1728
      %1730 = vmax.xlane.f32.xlu0 %v1668
      %v1731 = vpop.xlane.xlu0 %1730
      %1732 = vmax.xlane.f32.xlu0 %v1669
      %v1733 = vpop.xlane.xlu0 %1732
      %v1734 = vsub.f32 %v1581, %v1671
      %v1735 = vsub.f32 %v1582, %v1673
      %v1736 = vsub.f32 %v1583, %v1675
      %v1737 = vsub.f32 %v1584, %v1677
      %v1738 = vsub.f32 %v1585, %v1679
      %v1739 = vsub.f32 %v1586, %v1681
      %v1740 = vsub.f32 %v1587, %v1683
      %v1741 = vsub.f32 %v1588, %v1685
      %v1742 = vsub.f32 %v1589, %v1687
      %v1743 = vsub.f32 %v1590, %v1689
      %v1744 = vsub.f32 %v1591, %v1691
      %v1745 = vsub.f32 %v1592, %v1693
      %v1746 = vsub.f32 %v1593, %v1695
      %v1747 = vsub.f32 %v1594, %v1697
      %v1748 = vsub.f32 %v1595, %v1699
      %v1749 = vsub.f32 %v1596, %v1701
      %v1750 = vsub.f32 %v1597, %v1703
      %v1751 = vsub.f32 %v1598, %v1705
      %v1752 = vsub.f32 %v1599, %v1707
      %v1753 = vsub.f32 %v1600, %v1709
      %v1754 = vsub.f32 %v1601, %v1711
      %v1755 = vsub.f32 %v1602, %v1713
      %v1756 = vsub.f32 %v1603, %v1715
      %v1757 = vsub.f32 %v1604, %v1717
      %v1758 = vsub.f32 %v1605, %v1719
      %v1759 = vsub.f32 %v1606, %v1721
      %v1760 = vsub.f32 %v1607, %v1723
      %v1761 = vsub.f32 %v1608, %v1725
      %v1762 = vsub.f32 %v1609, %v1727
      %v1763 = vsub.f32 %v1610, %v1729
      %v1764 = vsub.f32 %v1611, %v1731
      %v1765 = vsub.f32 %v1612, %v1733
      %v1766 = vand.u32 2147483647, %v1581
      %v1767 = vand.u32 2147483647, %v1582
      %v1768 = vand.u32 2147483647, %v1583
      %v1769 = vand.u32 2147483647, %v1584
      %v1770 = vand.u32 2147483647, %v1585
      %v1771 = vand.u32 2147483647, %v1586
      %v1772 = vand.u32 2147483647, %v1587
      %v1773 = vand.u32 2147483647, %v1588
      %v1774 = vand.u32 2147483647, %v1589
      %v1775 = vand.u32 2147483647, %v1590
      %v1776 = vand.u32 2147483647, %v1591
      %v1777 = vand.u32 2147483647, %v1592
      %v1778 = vand.u32 2147483647, %v1593
      %v1779 = vand.u32 2147483647, %v1594
      %v1780 = vand.u32 2147483647, %v1595
      %v1781 = vand.u32 2147483647, %v1596
      %v1782 = vand.u32 2147483647, %v1597
      %v1783 = vand.u32 2147483647, %v1598
      %v1784 = vand.u32 2147483647, %v1599
      %v1785 = vand.u32 2147483647, %v1600
      %v1786 = vand.u32 2147483647, %v1601
      %v1787 = vand.u32 2147483647, %v1602
      %v1788 = vand.u32 2147483647, %v1603
      %v1789 = vand.u32 2147483647, %v1604
      %v1790 = vand.u32 2147483647, %v1605
      %v1791 = vand.u32 2147483647, %v1606
      %v1792 = vand.u32 2147483647, %v1607
      %v1793 = vand.u32 2147483647, %v1608
      %v1794 = vand.u32 2147483647, %v1609
      %v1795 = vand.u32 2147483647, %v1610
      %v1796 = vand.u32 2147483647, %v1611
      %v1797 = vand.u32 2147483647, %v1612
      %v1798 = vmul.f32 %v1766, -2.0
      %v1799 = vmul.f32 %v1767, -2.0
      %v1800 = vmul.f32 %v1768, -2.0
      %v1801 = vmul.f32 %v1769, -2.0
      %v1802 = vmul.f32 %v1770, -2.0
      %v1803 = vmul.f32 %v1771, -2.0
      %v1804 = vmul.f32 %v1772, -2.0
      %v1805 = vmul.f32 %v1773, -2.0
      %v1806 = vmul.f32 %v1774, -2.0
      %v1807 = vmul.f32 %v1775, -2.0
      %v1808 = vmul.f32 %v1776, -2.0
      %v1809 = vmul.f32 %v1777, -2.0
      %v1810 = vmul.f32 %v1778, -2.0
      %v1811 = vmul.f32 %v1779, -2.0
      %v1812 = vmul.f32 %v1780, -2.0
      %v1813 = vmul.f32 %v1781, -2.0
      %v1814 = vmul.f32 %v1782, -2.0
      %v1815 = vmul.f32 %v1783, -2.0
      %v1816 = vmul.f32 %v1784, -2.0
      %v1817 = vmul.f32 %v1785, -2.0
      %v1818 = vmul.f32 %v1786, -2.0
      %v1819 = vmul.f32 %v1787, -2.0
      %v1820 = vmul.f32 %v1788, -2.0
      %v1821 = vmul.f32 %v1789, -2.0
      %v1822 = vmul.f32 %v1790, -2.0
      %v1823 = vmul.f32 %v1791, -2.0
      %v1824 = vmul.f32 %v1792, -2.0
      %v1825 = vmul.f32 %v1793, -2.0
      %v1826 = vmul.f32 %v1794, -2.0
      %v1827 = vmul.f32 %v1795, -2.0
      %v1828 = vmul.f32 %v1796, -2.0
      %v1829 = vmul.f32 %v1797, -2.0
      %v1830 = vsel %vm1627, 1, 0
      %vm1831 = vcmp.eq.s32.totalorder %v1830, 1
      %v1832 = vsel %vm1831, %v1798, 0.0
      %v1833 = vsel %vm1831, %v1799, 0.0
      %v1834 = vsel %vm1831, %v1800, 0.0
      %v1835 = vsel %vm1831, %v1801, 0.0
      %v1836 = vsel %vm1831, %v1802, 0.0
      %v1837 = vsel %vm1831, %v1803, 0.0
      %v1838 = vsel %vm1831, %v1804, 0.0
      %v1839 = vsel %vm1831, %v1805, 0.0
      %v1840 = vsel %vm1831, %v1806, 0.0
      %v1841 = vsel %vm1831, %v1807, 0.0
      %v1842 = vsel %vm1831, %v1808, 0.0
      %v1843 = vsel %vm1831, %v1809, 0.0
      %v1844 = vsel %vm1831, %v1810, 0.0
      %v1845 = vsel %vm1831, %v1811, 0.0
      %v1846 = vsel %vm1831, %v1812, 0.0
      %v1847 = vsel %vm1831, %v1813, 0.0
      %v1848 = vsel %vm1831, %v1814, 0.0
      %v1849 = vsel %vm1831, %v1815, 0.0
      %v1850 = vsel %vm1831, %v1816, 0.0
      %v1851 = vsel %vm1831, %v1817, 0.0
      %v1852 = vsel %vm1831, %v1818, 0.0
      %v1853 = vsel %vm1831, %v1819, 0.0
      %v1854 = vsel %vm1831, %v1820, 0.0
      %v1855 = vsel %vm1831, %v1821, 0.0
      %v1856 = vsel %vm1831, %v1822, 0.0
      %v1857 = vsel %vm1831, %v1823, 0.0
      %v1858 = vsel %vm1831, %v1824, 0.0
      %v1859 = vsel %vm1831, %v1825, 0.0
      %v1860 = vsel %vm1831, %v1826, 0.0
      %v1861 = vsel %vm1831, %v1827, 0.0
      %v1862 = vsel %vm1831, %v1828, 0.0
      %v1863 = vsel %vm1831, %v1829, 0.0
      %v1864 = vsel %vm1637, %v1734, %v1832
      %v1865 = vsel %vm1637, %v1735, %v1833
      %v1866 = vsel %vm1637, %v1736, %v1834
      %v1867 = vsel %vm1637, %v1737, %v1835
      %v1868 = vsel %vm1637, %v1738, %v1836
      %v1869 = vsel %vm1637, %v1739, %v1837
      %v1870 = vsel %vm1637, %v1740, %v1838
      %v1871 = vsel %vm1637, %v1741, %v1839
      %v1872 = vsel %vm1637, %v1742, %v1840
      %v1873 = vsel %vm1637, %v1743, %v1841
      %v1874 = vsel %vm1637, %v1744, %v1842
      %v1875 = vsel %vm1637, %v1745, %v1843
      %v1876 = vsel %vm1637, %v1746, %v1844
      %v1877 = vsel %vm1637, %v1747, %v1845
      %v1878 = vsel %vm1637, %v1748, %v1846
      %v1879 = vsel %vm1637, %v1749, %v1847
      %v1880 = vsel %vm1637, %v1750, %v1848
      %v1881 = vsel %vm1637, %v1751, %v1849
      %v1882 = vsel %vm1637, %v1752, %v1850
      %v1883 = vsel %vm1637, %v1753, %v1851
      %v1884 = vsel %vm1637, %v1754, %v1852
      %v1885 = vsel %vm1637, %v1755, %v1853
      %v1886 = vsel %vm1637, %v1756, %v1854
      %v1887 = vsel %vm1637, %v1757, %v1855
      %v1888 = vsel %vm1637, %v1758, %v1856
      %v1889 = vsel %vm1637, %v1759, %v1857
      %v1890 = vsel %vm1637, %v1760, %v1858
      %v1891 = vsel %vm1637, %v1761, %v1859
      %v1892 = vsel %vm1637, %v1762, %v1860
      %v1893 = vsel %vm1637, %v1763, %v1861
      %v1894 = vsel %vm1637, %v1764, %v1862
      %v1895 = vsel %vm1637, %v1765, %v1863
      %v1896 = vmul.f32 %v1864, 1.442695
      %v1897 = vpow.pop %v1896
      %v1898 = vmul.f32 %v1865, 1.442695
      %v1899 = vpow.pop %v1898
      %v1900 = vmul.f32 %v1866, 1.442695
      %v1901 = vpow.pop %v1900
      %v1902 = vmul.f32 %v1867, 1.442695
      %v1903 = vpow.pop %v1902
      %v1904 = vmul.f32 %v1868, 1.442695
      %v1905 = vpow.pop %v1904
      %v1906 = vmul.f32 %v1869, 1.442695
      %v1907 = vpow.pop %v1906
      %v1908 = vmul.f32 %v1870, 1.442695
      %v1909 = vpow.pop %v1908
      %v1910 = vmul.f32 %v1871, 1.442695
      %v1911 = vpow.pop %v1910
      %v1912 = vmul.f32 %v1872, 1.442695
      %v1913 = vpow.pop %v1912
      %v1914 = vmul.f32 %v1873, 1.442695
      %v1915 = vpow.pop %v1914
      %v1916 = vmul.f32 %v1874, 1.442695
      %v1917 = vpow.pop %v1916
      %v1918 = vmul.f32 %v1875, 1.442695
      %v1919 = vpow.pop %v1918
      %v1920 = vmul.f32 %v1876, 1.442695
      %v1921 = vpow.pop %v1920
      %v1922 = vmul.f32 %v1877, 1.442695
      %v1923 = vpow.pop %v1922
      %v1924 = vmul.f32 %v1878, 1.442695
      %v1925 = vpow.pop %v1924
      %v1926 = vmul.f32 %v1879, 1.442695
      %v1927 = vpow.pop %v1926
      %v1928 = vmul.f32 %v1880, 1.442695
      %v1929 = vpow.pop %v1928
      %v1930 = vmul.f32 %v1881, 1.442695
      %v1931 = vpow.pop %v1930
      %v1932 = vmul.f32 %v1882, 1.442695
      %v1933 = vpow.pop %v1932
      %v1934 = vmul.f32 %v1883, 1.442695
      %v1935 = vpow.pop %v1934
      %v1936 = vmul.f32 %v1884, 1.442695
      %v1937 = vpow.pop %v1936
      %v1938 = vmul.f32 %v1885, 1.442695
      %v1939 = vpow.pop %v1938
      %v1940 = vmul.f32 %v1886, 1.442695
      %v1941 = vpow.pop %v1940
      %v1942 = vmul.f32 %v1887, 1.442695
      %v1943 = vpow.pop %v1942
      %v1944 = vmul.f32 %v1888, 1.442695
      %v1945 = vpow.pop %v1944
      %v1946 = vmul.f32 %v1889, 1.442695
      %v1947 = vpow.pop %v1946
      %v1948 = vmul.f32 %v1890, 1.442695
      %v1949 = vpow.pop %v1948
      %v1950 = vmul.f32 %v1891, 1.442695
      %v1951 = vpow.pop %v1950
      %v1952 = vmul.f32 %v1892, 1.442695
      %v1953 = vpow.pop %v1952
      %v1954 = vmul.f32 %v1893, 1.442695
      %v1955 = vpow.pop %v1954
      %v1956 = vmul.f32 %v1894, 1.442695
      %v1957 = vpow.pop %v1956
      %v1958 = vmul.f32 %v1895, 1.442695
      %v1959 = vpow.pop %v1958
      %v1960 = vld [vmem:[%s7] sm:$0xff]
      %v1961 = vld [vmem:[%s7 + $0x8] sm:$0xff]
      %v1962 = vld [vmem:[%s7 + $0x10] sm:$0xff]
      %v1963 = vld [vmem:[%s7 + $0x18] sm:$0xff]
      %v1964 = vld [vmem:[%s7 + $0x20] sm:$0xff]
      %v1965 = vld [vmem:[%s7 + $0x28] sm:$0xff]
      %v1966 = vld [vmem:[%s7 + $0x30] sm:$0xff]
      %v1967 = vld [vmem:[%s7 + $0x38] sm:$0xff]
      %v1968 = vld [vmem:[%s7 + $0x40] sm:$0xff]
      %v1969 = vld [vmem:[%s7 + $0x48] sm:$0xff]
      %v1970 = vld [vmem:[%s7 + $0x50] sm:$0xff]
      %v1971 = vld [vmem:[%s7 + $0x58] sm:$0xff]
      %v1972 = vld [vmem:[%s7 + $0x60] sm:$0xff]
      %v1973 = vld [vmem:[%s7 + $0x68] sm:$0xff]
      %v1974 = vld [vmem:[%s7 + $0x70] sm:$0xff]
      %v1975 = vld [vmem:[%s7 + $0x78] sm:$0xff]
      %1976 = vmatpush.msra.mxu0 %v1975
      %1977 = vmatpush.msra.mxu0 %v1974
      %1978 = vmatpush.msra.mxu0 %v1973
      %1979 = vmatpush.msra.mxu0 %v1972
      %1980 = vmatpush.msra.mxu0 %v1971
      %1981 = vmatpush.msra.mxu0 %v1970
      %1982 = vmatpush.msra.mxu0 %v1969
      %1983 = vmatpush.msra.mxu0 %v1968
      %1984 = vmatpush.msra.mxu0 %v1967
      %1985 = vmatpush.msra.mxu0 %v1966
      %1986 = vmatpush.msra.mxu0 %v1965
      %1987 = vmatpush.msra.mxu0 %v1964
      %1988 = vmatpush.msra.mxu0 %v1963
      %1989 = vmatpush.msra.mxu0 %v1962
      %1990 = vmatpush.msra.mxu0 %v1961
      %1991 = vmatpush.msra.mxu0 %v1960
      %1992 = vmatmul.f32.gmra.mxu0 %v1897
      %v1993 = vpop.f32.mrf.mxu0
      %v1994 = vadd.f32 0.0, %v1993
      %1995 = vmatmul.f32.gmra.mxu0 %v1899
      %v1996 = vpop.f32.mrf.mxu0
      %v1997 = vadd.f32 0.0, %v1996
      %1998 = vmatmul.f32.gmra.mxu0 %v1901
      %v1999 = vpop.f32.mrf.mxu0
      %v2000 = vadd.f32 0.0, %v1999
      %2001 = vmatmul.f32.gmra.mxu0 %v1903
      %v2002 = vpop.f32.mrf.mxu0
      %v2003 = vadd.f32 0.0, %v2002
      %2004 = vmatmul.f32.gmra.mxu0 %v1905
      %v2005 = vpop.f32.mrf.mxu0
      %v2006 = vadd.f32 0.0, %v2005
      %2007 = vmatmul.f32.gmra.mxu0 %v1907
      %v2008 = vpop.f32.mrf.mxu0
      %v2009 = vadd.f32 0.0, %v2008
      %2010 = vmatmul.f32.gmra.mxu0 %v1909
      %v2011 = vpop.f32.mrf.mxu0
      %v2012 = vadd.f32 0.0, %v2011
      %2013 = vmatmul.f32.gmra.mxu0 %v1911
      %v2014 = vpop.f32.mrf.mxu0
      %v2015 = vadd.f32 0.0, %v2014
      %2016 = vmatmul.f32.gmra.mxu0 %v1913
      %v2017 = vpop.f32.mrf.mxu0
      %v2018 = vadd.f32 0.0, %v2017
      %2019 = vmatmul.f32.gmra.mxu0 %v1915
      %v2020 = vpop.f32.mrf.mxu0
      %v2021 = vadd.f32 0.0, %v2020
      %2022 = vmatmul.f32.gmra.mxu0 %v1917
      %v2023 = vpop.f32.mrf.mxu0
      %v2024 = vadd.f32 0.0, %v2023
      %2025 = vmatmul.f32.gmra.mxu0 %v1919
      %v2026 = vpop.f32.mrf.mxu0
      %v2027 = vadd.f32 0.0, %v2026
      %2028 = vmatmul.f32.gmra.mxu0 %v1921
      %v2029 = vpop.f32.mrf.mxu0
      %v2030 = vadd.f32 0.0, %v2029
      %2031 = vmatmul.f32.gmra.mxu0 %v1923
      %v2032 = vpop.f32.mrf.mxu0
      %v2033 = vadd.f32 0.0, %v2032
      %2034 = vmatmul.f32.gmra.mxu0 %v1925
      %v2035 = vpop.f32.mrf.mxu0
      %v2036 = vadd.f32 0.0, %v2035
      %2037 = vmatmul.f32.gmra.mxu0 %v1927
      %v2038 = vpop.f32.mrf.mxu0
      %v2039 = vadd.f32 0.0, %v2038
      %2040 = vmatmul.f32.gmra.mxu0 %v1929
      %v2041 = vpop.f32.mrf.mxu0
      %v2042 = vadd.f32 0.0, %v2041
      %2043 = vmatmul.f32.gmra.mxu0 %v1931
      %v2044 = vpop.f32.mrf.mxu0
      %v2045 = vadd.f32 0.0, %v2044
      %2046 = vmatmul.f32.gmra.mxu0 %v1933
      %v2047 = vpop.f32.mrf.mxu0
      %v2048 = vadd.f32 0.0, %v2047
      %2049 = vmatmul.f32.gmra.mxu0 %v1935
      %v2050 = vpop.f32.mrf.mxu0
      %v2051 = vadd.f32 0.0, %v2050
      %2052 = vmatmul.f32.gmra.mxu0 %v1937
      %v2053 = vpop.f32.mrf.mxu0
      %v2054 = vadd.f32 0.0, %v2053
      %2055 = vmatmul.f32.gmra.mxu0 %v1939
      %v2056 = vpop.f32.mrf.mxu0
      %v2057 = vadd.f32 0.0, %v2056
      %2058 = vmatmul.f32.gmra.mxu0 %v1941
      %v2059 = vpop.f32.mrf.mxu0
      %v2060 = vadd.f32 0.0, %v2059
      %2061 = vmatmul.f32.gmra.mxu0 %v1943
      %v2062 = vpop.f32.mrf.mxu0
      %v2063 = vadd.f32 0.0, %v2062
      %2064 = vmatmul.f32.gmra.mxu0 %v1945
      %v2065 = vpop.f32.mrf.mxu0
      %v2066 = vadd.f32 0.0, %v2065
      %2067 = vmatmul.f32.gmra.mxu0 %v1947
      %v2068 = vpop.f32.mrf.mxu0
      %v2069 = vadd.f32 0.0, %v2068
      %2070 = vmatmul.f32.gmra.mxu0 %v1949
      %v2071 = vpop.f32.mrf.mxu0
      %v2072 = vadd.f32 0.0, %v2071
      %2073 = vmatmul.f32.gmra.mxu0 %v1951
      %v2074 = vpop.f32.mrf.mxu0
      %v2075 = vadd.f32 0.0, %v2074
      %2076 = vmatmul.f32.gmra.mxu0 %v1953
      %v2077 = vpop.f32.mrf.mxu0
      %v2078 = vadd.f32 0.0, %v2077
      %2079 = vmatmul.f32.gmra.mxu0 %v1955
      %v2080 = vpop.f32.mrf.mxu0
      %v2081 = vadd.f32 0.0, %v2080
      %2082 = vmatmul.f32.gmra.mxu0 %v1957
      %v2083 = vpop.f32.mrf.mxu0
      %v2084 = vadd.f32 0.0, %v2083
      %2085 = vmatmul.f32.gmra.mxu0 %v1959
      %v2086 = vpop.f32.mrf.mxu0
      %v2087 = vadd.f32 0.0, %v2086
      %2088 = vdwg.mxu0
      %v2089 = vmax.f32 %v1994, 1e-30
      %v2090 = vmax.f32 %v1997, 1e-30
      %v2091 = vmax.f32 %v2000, 1e-30
      %v2092 = vmax.f32 %v2003, 1e-30
      %v2093 = vmax.f32 %v2006, 1e-30
      %v2094 = vmax.f32 %v2009, 1e-30
      %v2095 = vmax.f32 %v2012, 1e-30
      %v2096 = vmax.f32 %v2015, 1e-30
      %v2097 = vmax.f32 %v2018, 1e-30
      %v2098 = vmax.f32 %v2021, 1e-30
      %v2099 = vmax.f32 %v2024, 1e-30
      %v2100 = vmax.f32 %v2027, 1e-30
      %v2101 = vmax.f32 %v2030, 1e-30
      %v2102 = vmax.f32 %v2033, 1e-30
      %v2103 = vmax.f32 %v2036, 1e-30
      %v2104 = vmax.f32 %v2039, 1e-30
      %v2105 = vmax.f32 %v2042, 1e-30
      %v2106 = vmax.f32 %v2045, 1e-30
      %v2107 = vmax.f32 %v2048, 1e-30
      %v2108 = vmax.f32 %v2051, 1e-30
      %v2109 = vmax.f32 %v2054, 1e-30
      %v2110 = vmax.f32 %v2057, 1e-30
      %v2111 = vmax.f32 %v2060, 1e-30
      %v2112 = vmax.f32 %v2063, 1e-30
      %v2113 = vmax.f32 %v2066, 1e-30
      %v2114 = vmax.f32 %v2069, 1e-30
      %v2115 = vmax.f32 %v2072, 1e-30
      %v2116 = vmax.f32 %v2075, 1e-30
      %v2117 = vmax.f32 %v2078, 1e-30
      %v2118 = vmax.f32 %v2081, 1e-30
      %v2119 = vmax.f32 %v2084, 1e-30
      %v2120 = vmax.f32 %v2087, 1e-30
      %v2121 = vadd.f32 %v1897, 1.0
      %v2122 = vadd.f32 %v1899, 1.0
      %v2123 = vadd.f32 %v1901, 1.0
      %v2124 = vadd.f32 %v1903, 1.0
      %v2125 = vadd.f32 %v1905, 1.0
      %v2126 = vadd.f32 %v1907, 1.0
      %v2127 = vadd.f32 %v1909, 1.0
      %v2128 = vadd.f32 %v1911, 1.0
      %v2129 = vadd.f32 %v1913, 1.0
      %v2130 = vadd.f32 %v1915, 1.0
      %v2131 = vadd.f32 %v1917, 1.0
      %v2132 = vadd.f32 %v1919, 1.0
      %v2133 = vadd.f32 %v1921, 1.0
      %v2134 = vadd.f32 %v1923, 1.0
      %v2135 = vadd.f32 %v1925, 1.0
      %v2136 = vadd.f32 %v1927, 1.0
      %v2137 = vadd.f32 %v1929, 1.0
      %v2138 = vadd.f32 %v1931, 1.0
      %v2139 = vadd.f32 %v1933, 1.0
      %v2140 = vadd.f32 %v1935, 1.0
      %v2141 = vadd.f32 %v1937, 1.0
      %v2142 = vadd.f32 %v1939, 1.0
      %v2143 = vadd.f32 %v1941, 1.0
      %v2144 = vadd.f32 %v1943, 1.0
      %v2145 = vadd.f32 %v1945, 1.0
      %v2146 = vadd.f32 %v1947, 1.0
      %v2147 = vadd.f32 %v1949, 1.0
      %v2148 = vadd.f32 %v1951, 1.0
      %v2149 = vadd.f32 %v1953, 1.0
      %v2150 = vadd.f32 %v1955, 1.0
      %v2151 = vadd.f32 %v1957, 1.0
      %v2152 = vadd.f32 %v1959, 1.0
      %v2153 = vsel %vm1637, %v2089, %v2121
      %v2154 = vsel %vm1637, %v2090, %v2122
      %v2155 = vsel %vm1637, %v2091, %v2123
      %v2156 = vsel %vm1637, %v2092, %v2124
      %v2157 = vsel %vm1637, %v2093, %v2125
      %v2158 = vsel %vm1637, %v2094, %v2126
      %v2159 = vsel %vm1637, %v2095, %v2127
      %v2160 = vsel %vm1637, %v2096, %v2128
      %v2161 = vsel %vm1637, %v2097, %v2129
      %v2162 = vsel %vm1637, %v2098, %v2130
      %v2163 = vsel %vm1637, %v2099, %v2131
      %v2164 = vsel %vm1637, %v2100, %v2132
      %v2165 = vsel %vm1637, %v2101, %v2133
      %v2166 = vsel %vm1637, %v2102, %v2134
      %v2167 = vsel %vm1637, %v2103, %v2135
      %v2168 = vsel %vm1637, %v2104, %v2136
      %v2169 = vsel %vm1637, %v2105, %v2137
      %v2170 = vsel %vm1637, %v2106, %v2138
      %v2171 = vsel %vm1637, %v2107, %v2139
      %v2172 = vsel %vm1637, %v2108, %v2140
      %v2173 = vsel %vm1637, %v2109, %v2141
      %v2174 = vsel %vm1637, %v2110, %v2142
      %v2175 = vsel %vm1637, %v2111, %v2143
      %v2176 = vsel %vm1637, %v2112, %v2144
      %v2177 = vsel %vm1637, %v2113, %v2145
      %v2178 = vsel %vm1637, %v2114, %v2146
      %v2179 = vsel %vm1637, %v2115, %v2147
      %v2180 = vsel %vm1637, %v2116, %v2148
      %v2181 = vsel %vm1637, %v2117, %v2149
      %v2182 = vsel %vm1637, %v2118, %v2150
      %v2183 = vsel %vm1637, %v2119, %v2151
      %v2184 = vsel %vm1637, %v2120, %v2152
      %v2185 = vrcp.pop %v2153
      %v2186 = vmul.f32 %v2153, %v2185
      %v2187 = vsub.f32 1.0, %v2186
      %v2188 = vmul.f32 %v2185, %v2187
      %v2189 = vadd.f32 %v2185, %v2188
      %vm2190 = vweird.f32 %v2153
      %vm2191 = vweird.f32 %v2185
      %vm2192 = vmor %vm2190, %vm2191
      %v2193 = vsel %vm2192, %v2185, %v2189
      %v2194 = vand.u32 2147483647, %v2153
      %vm2195 = vcmp.eq.f32.partialorder %v2194, 8.507059e+37
      %v2196 = vand.u32 %v2153, 2147483648
      %v2197 = vor.u32 1.1754944e-38, %v2196
      %v2198 = vsel %vm2195, %v2197, %v2193
      %v2199 = vmul.f32 1.0, %v2198
      %v2200 = vrcp.pop %v2154
      %v2201 = vmul.f32 %v2154, %v2200
      %v2202 = vsub.f32 1.0, %v2201
      %v2203 = vmul.f32 %v2200, %v2202
      %v2204 = vadd.f32 %v2200, %v2203
      %vm2205 = vweird.f32 %v2154
      %vm2206 = vweird.f32 %v2200
      %vm2207 = vmor %vm2205, %vm2206
      %v2208 = vsel %vm2207, %v2200, %v2204
      %v2209 = vand.u32 2147483647, %v2154
      %vm2210 = vcmp.eq.f32.partialorder %v2209, 8.507059e+37
      %v2211 = vand.u32 %v2154, 2147483648
      %v2212 = vor.u32 1.1754944e-38, %v2211
      %v2213 = vsel %vm2210, %v2212, %v2208
      %v2214 = vmul.f32 1.0, %v2213
      %v2215 = vrcp.pop %v2155
      %v2216 = vmul.f32 %v2155, %v2215
      %v2217 = vsub.f32 1.0, %v2216
      %v2218 = vmul.f32 %v2215, %v2217
      %v2219 = vadd.f32 %v2215, %v2218
      %vm2220 = vweird.f32 %v2155
      %vm2221 = vweird.f32 %v2215
      %vm2222 = vmor %vm2220, %vm2221
      %v2223 = vsel %vm2222, %v2215, %v2219
      %v2224 = vand.u32 2147483647, %v2155
      %vm2225 = vcmp.eq.f32.partialorder %v2224, 8.507059e+37
      %v2226 = vand.u32 %v2155, 2147483648
      %v2227 = vor.u32 1.1754944e-38, %v2226
      %v2228 = vsel %vm2225, %v2227, %v2223
      %v2229 = vmul.f32 1.0, %v2228
      %v2230 = vrcp.pop %v2156
      %v2231 = vmul.f32 %v2156, %v2230
      %v2232 = vsub.f32 1.0, %v2231
      %v2233 = vmul.f32 %v2230, %v2232
      %v2234 = vadd.f32 %v2230, %v2233
      %vm2235 = vweird.f32 %v2156
      %vm2236 = vweird.f32 %v2230
      %vm2237 = vmor %vm2235, %vm2236
      %v2238 = vsel %vm2237, %v2230, %v2234
      %v2239 = vand.u32 2147483647, %v2156
      %vm2240 = vcmp.eq.f32.partialorder %v2239, 8.507059e+37
      %v2241 = vand.u32 %v2156, 2147483648
      %v2242 = vor.u32 1.1754944e-38, %v2241
      %v2243 = vsel %vm2240, %v2242, %v2238
      %v2244 = vmul.f32 1.0, %v2243
      %v2245 = vrcp.pop %v2157
      %v2246 = vmul.f32 %v2157, %v2245
      %v2247 = vsub.f32 1.0, %v2246
      %v2248 = vmul.f32 %v2245, %v2247
      %v2249 = vadd.f32 %v2245, %v2248
      %vm2250 = vweird.f32 %v2157
      %vm2251 = vweird.f32 %v2245
      %vm2252 = vmor %vm2250, %vm2251
      %v2253 = vsel %vm2252, %v2245, %v2249
      %v2254 = vand.u32 2147483647, %v2157
      %vm2255 = vcmp.eq.f32.partialorder %v2254, 8.507059e+37
      %v2256 = vand.u32 %v2157, 2147483648
      %v2257 = vor.u32 1.1754944e-38, %v2256
      %v2258 = vsel %vm2255, %v2257, %v2253
      %v2259 = vmul.f32 1.0, %v2258
      %v2260 = vrcp.pop %v2158
      %v2261 = vmul.f32 %v2158, %v2260
      %v2262 = vsub.f32 1.0, %v2261
      %v2263 = vmul.f32 %v2260, %v2262
      %v2264 = vadd.f32 %v2260, %v2263
      %vm2265 = vweird.f32 %v2158
      %vm2266 = vweird.f32 %v2260
      %vm2267 = vmor %vm2265, %vm2266
      %v2268 = vsel %vm2267, %v2260, %v2264
      %v2269 = vand.u32 2147483647, %v2158
      %vm2270 = vcmp.eq.f32.partialorder %v2269, 8.507059e+37
      %v2271 = vand.u32 %v2158, 2147483648
      %v2272 = vor.u32 1.1754944e-38, %v2271
      %v2273 = vsel %vm2270, %v2272, %v2268
      %v2274 = vmul.f32 1.0, %v2273
      %v2275 = vrcp.pop %v2159
      %v2276 = vmul.f32 %v2159, %v2275
      %v2277 = vsub.f32 1.0, %v2276
      %v2278 = vmul.f32 %v2275, %v2277
      %v2279 = vadd.f32 %v2275, %v2278
      %vm2280 = vweird.f32 %v2159
      %vm2281 = vweird.f32 %v2275
      %vm2282 = vmor %vm2280, %vm2281
      %v2283 = vsel %vm2282, %v2275, %v2279
      %v2284 = vand.u32 2147483647, %v2159
      %vm2285 = vcmp.eq.f32.partialorder %v2284, 8.507059e+37
      %v2286 = vand.u32 %v2159, 2147483648
      %v2287 = vor.u32 1.1754944e-38, %v2286
      %v2288 = vsel %vm2285, %v2287, %v2283
      %v2289 = vmul.f32 1.0, %v2288
      %v2290 = vrcp.pop %v2160
      %v2291 = vmul.f32 %v2160, %v2290
      %v2292 = vsub.f32 1.0, %v2291
      %v2293 = vmul.f32 %v2290, %v2292
      %v2294 = vadd.f32 %v2290, %v2293
      %vm2295 = vweird.f32 %v2160
      %vm2296 = vweird.f32 %v2290
      %vm2297 = vmor %vm2295, %vm2296
      %v2298 = vsel %vm2297, %v2290, %v2294
      %v2299 = vand.u32 2147483647, %v2160
      %vm2300 = vcmp.eq.f32.partialorder %v2299, 8.507059e+37
      %v2301 = vand.u32 %v2160, 2147483648
      %v2302 = vor.u32 1.1754944e-38, %v2301
      %v2303 = vsel %vm2300, %v2302, %v2298
      %v2304 = vmul.f32 1.0, %v2303
      %v2305 = vrcp.pop %v2161
      %v2306 = vmul.f32 %v2161, %v2305
      %v2307 = vsub.f32 1.0, %v2306
      %v2308 = vmul.f32 %v2305, %v2307
      %v2309 = vadd.f32 %v2305, %v2308
      %vm2310 = vweird.f32 %v2161
      %vm2311 = vweird.f32 %v2305
      %vm2312 = vmor %vm2310, %vm2311
      %v2313 = vsel %vm2312, %v2305, %v2309
      %v2314 = vand.u32 2147483647, %v2161
      %vm2315 = vcmp.eq.f32.partialorder %v2314, 8.507059e+37
      %v2316 = vand.u32 %v2161, 2147483648
      %v2317 = vor.u32 1.1754944e-38, %v2316
      %v2318 = vsel %vm2315, %v2317, %v2313
      %v2319 = vmul.f32 1.0, %v2318
      %v2320 = vrcp.pop %v2162
      %v2321 = vmul.f32 %v2162, %v2320
      %v2322 = vsub.f32 1.0, %v2321
      %v2323 = vmul.f32 %v2320, %v2322
      %v2324 = vadd.f32 %v2320, %v2323
      %vm2325 = vweird.f32 %v2162
      %vm2326 = vweird.f32 %v2320
      %vm2327 = vmor %vm2325, %vm2326
      %v2328 = vsel %vm2327, %v2320, %v2324
      %v2329 = vand.u32 2147483647, %v2162
      %vm2330 = vcmp.eq.f32.partialorder %v2329, 8.507059e+37
      %v2331 = vand.u32 %v2162, 2147483648
      %v2332 = vor.u32 1.1754944e-38, %v2331
      %v2333 = vsel %vm2330, %v2332, %v2328
      %v2334 = vmul.f32 1.0, %v2333
      %v2335 = vrcp.pop %v2163
      %v2336 = vmul.f32 %v2163, %v2335
      %v2337 = vsub.f32 1.0, %v2336
      %v2338 = vmul.f32 %v2335, %v2337
      %v2339 = vadd.f32 %v2335, %v2338
      %vm2340 = vweird.f32 %v2163
      %vm2341 = vweird.f32 %v2335
      %vm2342 = vmor %vm2340, %vm2341
      %v2343 = vsel %vm2342, %v2335, %v2339
      %v2344 = vand.u32 2147483647, %v2163
      %vm2345 = vcmp.eq.f32.partialorder %v2344, 8.507059e+37
      %v2346 = vand.u32 %v2163, 2147483648
      %v2347 = vor.u32 1.1754944e-38, %v2346
      %v2348 = vsel %vm2345, %v2347, %v2343
      %v2349 = vmul.f32 1.0, %v2348
      %v2350 = vrcp.pop %v2164
      %v2351 = vmul.f32 %v2164, %v2350
      %v2352 = vsub.f32 1.0, %v2351
      %v2353 = vmul.f32 %v2350, %v2352
      %v2354 = vadd.f32 %v2350, %v2353
      %vm2355 = vweird.f32 %v2164
      %vm2356 = vweird.f32 %v2350
      %vm2357 = vmor %vm2355, %vm2356
      %v2358 = vsel %vm2357, %v2350, %v2354
      %v2359 = vand.u32 2147483647, %v2164
      %vm2360 = vcmp.eq.f32.partialorder %v2359, 8.507059e+37
      %v2361 = vand.u32 %v2164, 2147483648
      %v2362 = vor.u32 1.1754944e-38, %v2361
      %v2363 = vsel %vm2360, %v2362, %v2358
      %v2364 = vmul.f32 1.0, %v2363
      %v2365 = vrcp.pop %v2165
      %v2366 = vmul.f32 %v2165, %v2365
      %v2367 = vsub.f32 1.0, %v2366
      %v2368 = vmul.f32 %v2365, %v2367
      %v2369 = vadd.f32 %v2365, %v2368
      %vm2370 = vweird.f32 %v2165
      %vm2371 = vweird.f32 %v2365
      %vm2372 = vmor %vm2370, %vm2371
      %v2373 = vsel %vm2372, %v2365, %v2369
      %v2374 = vand.u32 2147483647, %v2165
      %vm2375 = vcmp.eq.f32.partialorder %v2374, 8.507059e+37
      %v2376 = vand.u32 %v2165, 2147483648
      %v2377 = vor.u32 1.1754944e-38, %v2376
      %v2378 = vsel %vm2375, %v2377, %v2373
      %v2379 = vmul.f32 1.0, %v2378
      %v2380 = vrcp.pop %v2166
      %v2381 = vmul.f32 %v2166, %v2380
      %v2382 = vsub.f32 1.0, %v2381
      %v2383 = vmul.f32 %v2380, %v2382
      %v2384 = vadd.f32 %v2380, %v2383
      %vm2385 = vweird.f32 %v2166
      %vm2386 = vweird.f32 %v2380
      %vm2387 = vmor %vm2385, %vm2386
      %v2388 = vsel %vm2387, %v2380, %v2384
      %v2389 = vand.u32 2147483647, %v2166
      %vm2390 = vcmp.eq.f32.partialorder %v2389, 8.507059e+37
      %v2391 = vand.u32 %v2166, 2147483648
      %v2392 = vor.u32 1.1754944e-38, %v2391
      %v2393 = vsel %vm2390, %v2392, %v2388
      %v2394 = vmul.f32 1.0, %v2393
      %v2395 = vrcp.pop %v2167
      %v2396 = vmul.f32 %v2167, %v2395
      %v2397 = vsub.f32 1.0, %v2396
      %v2398 = vmul.f32 %v2395, %v2397
      %v2399 = vadd.f32 %v2395, %v2398
      %vm2400 = vweird.f32 %v2167
      %vm2401 = vweird.f32 %v2395
      %vm2402 = vmor %vm2400, %vm2401
      %v2403 = vsel %vm2402, %v2395, %v2399
      %v2404 = vand.u32 2147483647, %v2167
      %vm2405 = vcmp.eq.f32.partialorder %v2404, 8.507059e+37
      %v2406 = vand.u32 %v2167, 2147483648
      %v2407 = vor.u32 1.1754944e-38, %v2406
      %v2408 = vsel %vm2405, %v2407, %v2403
      %v2409 = vmul.f32 1.0, %v2408
      %v2410 = vrcp.pop %v2168
      %v2411 = vmul.f32 %v2168, %v2410
      %v2412 = vsub.f32 1.0, %v2411
      %v2413 = vmul.f32 %v2410, %v2412
      %v2414 = vadd.f32 %v2410, %v2413
      %vm2415 = vweird.f32 %v2168
      %vm2416 = vweird.f32 %v2410
      %vm2417 = vmor %vm2415, %vm2416
      %v2418 = vsel %vm2417, %v2410, %v2414
      %v2419 = vand.u32 2147483647, %v2168
      %vm2420 = vcmp.eq.f32.partialorder %v2419, 8.507059e+37
      %v2421 = vand.u32 %v2168, 2147483648
      %v2422 = vor.u32 1.1754944e-38, %v2421
      %v2423 = vsel %vm2420, %v2422, %v2418
      %v2424 = vmul.f32 1.0, %v2423
      %v2425 = vrcp.pop %v2169
      %v2426 = vmul.f32 %v2169, %v2425
      %v2427 = vsub.f32 1.0, %v2426
      %v2428 = vmul.f32 %v2425, %v2427
      %v2429 = vadd.f32 %v2425, %v2428
      %vm2430 = vweird.f32 %v2169
      %vm2431 = vweird.f32 %v2425
      %vm2432 = vmor %vm2430, %vm2431
      %v2433 = vsel %vm2432, %v2425, %v2429
      %v2434 = vand.u32 2147483647, %v2169
      %vm2435 = vcmp.eq.f32.partialorder %v2434, 8.507059e+37
      %v2436 = vand.u32 %v2169, 2147483648
      %v2437 = vor.u32 1.1754944e-38, %v2436
      %v2438 = vsel %vm2435, %v2437, %v2433
      %v2439 = vmul.f32 1.0, %v2438
      %v2440 = vrcp.pop %v2170
      %v2441 = vmul.f32 %v2170, %v2440
      %v2442 = vsub.f32 1.0, %v2441
      %v2443 = vmul.f32 %v2440, %v2442
      %v2444 = vadd.f32 %v2440, %v2443
      %vm2445 = vweird.f32 %v2170
      %vm2446 = vweird.f32 %v2440
      %vm2447 = vmor %vm2445, %vm2446
      %v2448 = vsel %vm2447, %v2440, %v2444
      %v2449 = vand.u32 2147483647, %v2170
      %vm2450 = vcmp.eq.f32.partialorder %v2449, 8.507059e+37
      %v2451 = vand.u32 %v2170, 2147483648
      %v2452 = vor.u32 1.1754944e-38, %v2451
      %v2453 = vsel %vm2450, %v2452, %v2448
      %v2454 = vmul.f32 1.0, %v2453
      %v2455 = vrcp.pop %v2171
      %v2456 = vmul.f32 %v2171, %v2455
      %v2457 = vsub.f32 1.0, %v2456
      %v2458 = vmul.f32 %v2455, %v2457
      %v2459 = vadd.f32 %v2455, %v2458
      %vm2460 = vweird.f32 %v2171
      %vm2461 = vweird.f32 %v2455
      %vm2462 = vmor %vm2460, %vm2461
      %v2463 = vsel %vm2462, %v2455, %v2459
      %v2464 = vand.u32 2147483647, %v2171
      %vm2465 = vcmp.eq.f32.partialorder %v2464, 8.507059e+37
      %v2466 = vand.u32 %v2171, 2147483648
      %v2467 = vor.u32 1.1754944e-38, %v2466
      %v2468 = vsel %vm2465, %v2467, %v2463
      %v2469 = vmul.f32 1.0, %v2468
      %v2470 = vrcp.pop %v2172
      %v2471 = vmul.f32 %v2172, %v2470
      %v2472 = vsub.f32 1.0, %v2471
      %v2473 = vmul.f32 %v2470, %v2472
      %v2474 = vadd.f32 %v2470, %v2473
      %vm2475 = vweird.f32 %v2172
      %vm2476 = vweird.f32 %v2470
      %vm2477 = vmor %vm2475, %vm2476
      %v2478 = vsel %vm2477, %v2470, %v2474
      %v2479 = vand.u32 2147483647, %v2172
      %vm2480 = vcmp.eq.f32.partialorder %v2479, 8.507059e+37
      %v2481 = vand.u32 %v2172, 2147483648
      %v2482 = vor.u32 1.1754944e-38, %v2481
      %v2483 = vsel %vm2480, %v2482, %v2478
      %v2484 = vmul.f32 1.0, %v2483
      %v2485 = vrcp.pop %v2173
      %v2486 = vmul.f32 %v2173, %v2485
      %v2487 = vsub.f32 1.0, %v2486
      %v2488 = vmul.f32 %v2485, %v2487
      %v2489 = vadd.f32 %v2485, %v2488
      %vm2490 = vweird.f32 %v2173
      %vm2491 = vweird.f32 %v2485
      %vm2492 = vmor %vm2490, %vm2491
      %v2493 = vsel %vm2492, %v2485, %v2489
      %v2494 = vand.u32 2147483647, %v2173
      %vm2495 = vcmp.eq.f32.partialorder %v2494, 8.507059e+37
      %v2496 = vand.u32 %v2173, 2147483648
      %v2497 = vor.u32 1.1754944e-38, %v2496
      %v2498 = vsel %vm2495, %v2497, %v2493
      %v2499 = vmul.f32 1.0, %v2498
      %v2500 = vrcp.pop %v2174
      %v2501 = vmul.f32 %v2174, %v2500
      %v2502 = vsub.f32 1.0, %v2501
      %v2503 = vmul.f32 %v2500, %v2502
      %v2504 = vadd.f32 %v2500, %v2503
      %vm2505 = vweird.f32 %v2174
      %vm2506 = vweird.f32 %v2500
      %vm2507 = vmor %vm2505, %vm2506
      %v2508 = vsel %vm2507, %v2500, %v2504
      %v2509 = vand.u32 2147483647, %v2174
      %vm2510 = vcmp.eq.f32.partialorder %v2509, 8.507059e+37
      %v2511 = vand.u32 %v2174, 2147483648
      %v2512 = vor.u32 1.1754944e-38, %v2511
      %v2513 = vsel %vm2510, %v2512, %v2508
      %v2514 = vmul.f32 1.0, %v2513
      %v2515 = vrcp.pop %v2175
      %v2516 = vmul.f32 %v2175, %v2515
      %v2517 = vsub.f32 1.0, %v2516
      %v2518 = vmul.f32 %v2515, %v2517
      %v2519 = vadd.f32 %v2515, %v2518
      %vm2520 = vweird.f32 %v2175
      %vm2521 = vweird.f32 %v2515
      %vm2522 = vmor %vm2520, %vm2521
      %v2523 = vsel %vm2522, %v2515, %v2519
      %v2524 = vand.u32 2147483647, %v2175
      %vm2525 = vcmp.eq.f32.partialorder %v2524, 8.507059e+37
      %v2526 = vand.u32 %v2175, 2147483648
      %v2527 = vor.u32 1.1754944e-38, %v2526
      %v2528 = vsel %vm2525, %v2527, %v2523
      %v2529 = vmul.f32 1.0, %v2528
      %v2530 = vrcp.pop %v2176
      %v2531 = vmul.f32 %v2176, %v2530
      %v2532 = vsub.f32 1.0, %v2531
      %v2533 = vmul.f32 %v2530, %v2532
      %v2534 = vadd.f32 %v2530, %v2533
      %vm2535 = vweird.f32 %v2176
      %vm2536 = vweird.f32 %v2530
      %vm2537 = vmor %vm2535, %vm2536
      %v2538 = vsel %vm2537, %v2530, %v2534
      %v2539 = vand.u32 2147483647, %v2176
      %vm2540 = vcmp.eq.f32.partialorder %v2539, 8.507059e+37
      %v2541 = vand.u32 %v2176, 2147483648
      %v2542 = vor.u32 1.1754944e-38, %v2541
      %v2543 = vsel %vm2540, %v2542, %v2538
      %v2544 = vmul.f32 1.0, %v2543
      %v2545 = vrcp.pop %v2177
      %v2546 = vmul.f32 %v2177, %v2545
      %v2547 = vsub.f32 1.0, %v2546
      %v2548 = vmul.f32 %v2545, %v2547
      %v2549 = vadd.f32 %v2545, %v2548
      %vm2550 = vweird.f32 %v2177
      %vm2551 = vweird.f32 %v2545
      %vm2552 = vmor %vm2550, %vm2551
      %v2553 = vsel %vm2552, %v2545, %v2549
      %v2554 = vand.u32 2147483647, %v2177
      %vm2555 = vcmp.eq.f32.partialorder %v2554, 8.507059e+37
      %v2556 = vand.u32 %v2177, 2147483648
      %v2557 = vor.u32 1.1754944e-38, %v2556
      %v2558 = vsel %vm2555, %v2557, %v2553
      %v2559 = vmul.f32 1.0, %v2558
      %v2560 = vrcp.pop %v2178
      %v2561 = vmul.f32 %v2178, %v2560
      %v2562 = vsub.f32 1.0, %v2561
      %v2563 = vmul.f32 %v2560, %v2562
      %v2564 = vadd.f32 %v2560, %v2563
      %vm2565 = vweird.f32 %v2178
      %vm2566 = vweird.f32 %v2560
      %vm2567 = vmor %vm2565, %vm2566
      %v2568 = vsel %vm2567, %v2560, %v2564
      %v2569 = vand.u32 2147483647, %v2178
      %vm2570 = vcmp.eq.f32.partialorder %v2569, 8.507059e+37
      %v2571 = vand.u32 %v2178, 2147483648
      %v2572 = vor.u32 1.1754944e-38, %v2571
      %v2573 = vsel %vm2570, %v2572, %v2568
      %v2574 = vmul.f32 1.0, %v2573
      %v2575 = vrcp.pop %v2179
      %v2576 = vmul.f32 %v2179, %v2575
      %v2577 = vsub.f32 1.0, %v2576
      %v2578 = vmul.f32 %v2575, %v2577
      %v2579 = vadd.f32 %v2575, %v2578
      %vm2580 = vweird.f32 %v2179
      %vm2581 = vweird.f32 %v2575
      %vm2582 = vmor %vm2580, %vm2581
      %v2583 = vsel %vm2582, %v2575, %v2579
      %v2584 = vand.u32 2147483647, %v2179
      %vm2585 = vcmp.eq.f32.partialorder %v2584, 8.507059e+37
      %v2586 = vand.u32 %v2179, 2147483648
      %v2587 = vor.u32 1.1754944e-38, %v2586
      %v2588 = vsel %vm2585, %v2587, %v2583
      %v2589 = vmul.f32 1.0, %v2588
      %v2590 = vrcp.pop %v2180
      %v2591 = vmul.f32 %v2180, %v2590
      %v2592 = vsub.f32 1.0, %v2591
      %v2593 = vmul.f32 %v2590, %v2592
      %v2594 = vadd.f32 %v2590, %v2593
      %vm2595 = vweird.f32 %v2180
      %vm2596 = vweird.f32 %v2590
      %vm2597 = vmor %vm2595, %vm2596
      %v2598 = vsel %vm2597, %v2590, %v2594
      %v2599 = vand.u32 2147483647, %v2180
      %vm2600 = vcmp.eq.f32.partialorder %v2599, 8.507059e+37
      %v2601 = vand.u32 %v2180, 2147483648
      %v2602 = vor.u32 1.1754944e-38, %v2601
      %v2603 = vsel %vm2600, %v2602, %v2598
      %v2604 = vmul.f32 1.0, %v2603
      %v2605 = vrcp.pop %v2181
      %v2606 = vmul.f32 %v2181, %v2605
      %v2607 = vsub.f32 1.0, %v2606
      %v2608 = vmul.f32 %v2605, %v2607
      %v2609 = vadd.f32 %v2605, %v2608
      %vm2610 = vweird.f32 %v2181
      %vm2611 = vweird.f32 %v2605
      %vm2612 = vmor %vm2610, %vm2611
      %v2613 = vsel %vm2612, %v2605, %v2609
      %v2614 = vand.u32 2147483647, %v2181
      %vm2615 = vcmp.eq.f32.partialorder %v2614, 8.507059e+37
      %v2616 = vand.u32 %v2181, 2147483648
      %v2617 = vor.u32 1.1754944e-38, %v2616
      %v2618 = vsel %vm2615, %v2617, %v2613
      %v2619 = vmul.f32 1.0, %v2618
      %v2620 = vrcp.pop %v2182
      %v2621 = vmul.f32 %v2182, %v2620
      %v2622 = vsub.f32 1.0, %v2621
      %v2623 = vmul.f32 %v2620, %v2622
      %v2624 = vadd.f32 %v2620, %v2623
      %vm2625 = vweird.f32 %v2182
      %vm2626 = vweird.f32 %v2620
      %vm2627 = vmor %vm2625, %vm2626
      %v2628 = vsel %vm2627, %v2620, %v2624
      %v2629 = vand.u32 2147483647, %v2182
      %vm2630 = vcmp.eq.f32.partialorder %v2629, 8.507059e+37
      %v2631 = vand.u32 %v2182, 2147483648
      %v2632 = vor.u32 1.1754944e-38, %v2631
      %v2633 = vsel %vm2630, %v2632, %v2628
      %v2634 = vmul.f32 1.0, %v2633
      %v2635 = vrcp.pop %v2183
      %v2636 = vmul.f32 %v2183, %v2635
      %v2637 = vsub.f32 1.0, %v2636
      %v2638 = vmul.f32 %v2635, %v2637
      %v2639 = vadd.f32 %v2635, %v2638
      %vm2640 = vweird.f32 %v2183
      %vm2641 = vweird.f32 %v2635
      %vm2642 = vmor %vm2640, %vm2641
      %v2643 = vsel %vm2642, %v2635, %v2639
      %v2644 = vand.u32 2147483647, %v2183
      %vm2645 = vcmp.eq.f32.partialorder %v2644, 8.507059e+37
      %v2646 = vand.u32 %v2183, 2147483648
      %v2647 = vor.u32 1.1754944e-38, %v2646
      %v2648 = vsel %vm2645, %v2647, %v2643
      %v2649 = vmul.f32 1.0, %v2648
      %v2650 = vrcp.pop %v2184
      %v2651 = vmul.f32 %v2184, %v2650
      %v2652 = vsub.f32 1.0, %v2651
      %v2653 = vmul.f32 %v2650, %v2652
      %v2654 = vadd.f32 %v2650, %v2653
      %vm2655 = vweird.f32 %v2184
      %vm2656 = vweird.f32 %v2650
      %vm2657 = vmor %vm2655, %vm2656
      %v2658 = vsel %vm2657, %v2650, %v2654
      %v2659 = vand.u32 2147483647, %v2184
      %vm2660 = vcmp.eq.f32.partialorder %v2659, 8.507059e+37
      %v2661 = vand.u32 %v2184, 2147483648
      %v2662 = vor.u32 1.1754944e-38, %v2661
      %v2663 = vsel %vm2660, %v2662, %v2658
      %v2664 = vmul.f32 1.0, %v2663
      %vm2665 = vcmp.ge.f32.partialorder %v1581, 0.0
      %vm2666 = vcmp.ge.f32.partialorder %v1582, 0.0
      %vm2667 = vcmp.ge.f32.partialorder %v1583, 0.0
      %vm2668 = vcmp.ge.f32.partialorder %v1584, 0.0
      %vm2669 = vcmp.ge.f32.partialorder %v1585, 0.0
      %vm2670 = vcmp.ge.f32.partialorder %v1586, 0.0
      %vm2671 = vcmp.ge.f32.partialorder %v1587, 0.0
      %vm2672 = vcmp.ge.f32.partialorder %v1588, 0.0
      %vm2673 = vcmp.ge.f32.partialorder %v1589, 0.0
      %vm2674 = vcmp.ge.f32.partialorder %v1590, 0.0
      %vm2675 = vcmp.ge.f32.partialorder %v1591, 0.0
      %vm2676 = vcmp.ge.f32.partialorder %v1592, 0.0
      %vm2677 = vcmp.ge.f32.partialorder %v1593, 0.0
      %vm2678 = vcmp.ge.f32.partialorder %v1594, 0.0
      %vm2679 = vcmp.ge.f32.partialorder %v1595, 0.0
      %vm2680 = vcmp.ge.f32.partialorder %v1596, 0.0
      %vm2681 = vcmp.ge.f32.partialorder %v1597, 0.0
      %vm2682 = vcmp.ge.f32.partialorder %v1598, 0.0
      %vm2683 = vcmp.ge.f32.partialorder %v1599, 0.0
      %vm2684 = vcmp.ge.f32.partialorder %v1600, 0.0
      %vm2685 = vcmp.ge.f32.partialorder %v1601, 0.0
      %vm2686 = vcmp.ge.f32.partialorder %v1602, 0.0
      %vm2687 = vcmp.ge.f32.partialorder %v1603, 0.0
      %vm2688 = vcmp.ge.f32.partialorder %v1604, 0.0
      %vm2689 = vcmp.ge.f32.partialorder %v1605, 0.0
      %vm2690 = vcmp.ge.f32.partialorder %v1606, 0.0
      %vm2691 = vcmp.ge.f32.partialorder %v1607, 0.0
      %vm2692 = vcmp.ge.f32.partialorder %v1608, 0.0
      %vm2693 = vcmp.ge.f32.partialorder %v1609, 0.0
      %vm2694 = vcmp.ge.f32.partialorder %v1610, 0.0
      %vm2695 = vcmp.ge.f32.partialorder %v1611, 0.0
      %vm2696 = vcmp.ge.f32.partialorder %v1612, 0.0
      %v2697 = vsel %vm2665, 1.0, -1.0
      %v2698 = vsel %vm2666, 1.0, -1.0
      %v2699 = vsel %vm2667, 1.0, -1.0
      %v2700 = vsel %vm2668, 1.0, -1.0
      %v2701 = vsel %vm2669, 1.0, -1.0
      %v2702 = vsel %vm2670, 1.0, -1.0
      %v2703 = vsel %vm2671, 1.0, -1.0
      %v2704 = vsel %vm2672, 1.0, -1.0
      %v2705 = vsel %vm2673, 1.0, -1.0
      %v2706 = vsel %vm2674, 1.0, -1.0
      %v2707 = vsel %vm2675, 1.0, -1.0
      %v2708 = vsel %vm2676, 1.0, -1.0
      %v2709 = vsel %vm2677, 1.0, -1.0
      %v2710 = vsel %vm2678, 1.0, -1.0
      %v2711 = vsel %vm2679, 1.0, -1.0
      %v2712 = vsel %vm2680, 1.0, -1.0
      %v2713 = vsel %vm2681, 1.0, -1.0
      %v2714 = vsel %vm2682, 1.0, -1.0
      %v2715 = vsel %vm2683, 1.0, -1.0
      %v2716 = vsel %vm2684, 1.0, -1.0
      %v2717 = vsel %vm2685, 1.0, -1.0
      %v2718 = vsel %vm2686, 1.0, -1.0
      %v2719 = vsel %vm2687, 1.0, -1.0
      %v2720 = vsel %vm2688, 1.0, -1.0
      %v2721 = vsel %vm2689, 1.0, -1.0
      %v2722 = vsel %vm2690, 1.0, -1.0
      %v2723 = vsel %vm2691, 1.0, -1.0
      %v2724 = vsel %vm2692, 1.0, -1.0
      %v2725 = vsel %vm2693, 1.0, -1.0
      %v2726 = vsel %vm2694, 1.0, -1.0
      %v2727 = vsel %vm2695, 1.0, -1.0
      %v2728 = vsel %vm2696, 1.0, -1.0
      %v2729 = vsub.f32 1.0, %v1897
      %v2730 = vsub.f32 1.0, %v1899
      %v2731 = vsub.f32 1.0, %v1901
      %v2732 = vsub.f32 1.0, %v1903
      %v2733 = vsub.f32 1.0, %v1905
      %v2734 = vsub.f32 1.0, %v1907
      %v2735 = vsub.f32 1.0, %v1909
      %v2736 = vsub.f32 1.0, %v1911
      %v2737 = vsub.f32 1.0, %v1913
      %v2738 = vsub.f32 1.0, %v1915
      %v2739 = vsub.f32 1.0, %v1917
      %v2740 = vsub.f32 1.0, %v1919
      %v2741 = vsub.f32 1.0, %v1921
      %v2742 = vsub.f32 1.0, %v1923
      %v2743 = vsub.f32 1.0, %v1925
      %v2744 = vsub.f32 1.0, %v1927
      %v2745 = vsub.f32 1.0, %v1929
      %v2746 = vsub.f32 1.0, %v1931
      %v2747 = vsub.f32 1.0, %v1933
      %v2748 = vsub.f32 1.0, %v1935
      %v2749 = vsub.f32 1.0, %v1937
      %v2750 = vsub.f32 1.0, %v1939
      %v2751 = vsub.f32 1.0, %v1941
      %v2752 = vsub.f32 1.0, %v1943
      %v2753 = vsub.f32 1.0, %v1945
      %v2754 = vsub.f32 1.0, %v1947
      %v2755 = vsub.f32 1.0, %v1949
      %v2756 = vsub.f32 1.0, %v1951
      %v2757 = vsub.f32 1.0, %v1953
      %v2758 = vsub.f32 1.0, %v1955
      %v2759 = vsub.f32 1.0, %v1957
      %v2760 = vsub.f32 1.0, %v1959
      %v2761 = vmul.f32 %v2697, %v2729
      %v2762 = vmul.f32 %v2698, %v2730
      %v2763 = vmul.f32 %v2699, %v2731
      %v2764 = vmul.f32 %v2700, %v2732
      %v2765 = vmul.f32 %v2701, %v2733
      %v2766 = vmul.f32 %v2702, %v2734
      %v2767 = vmul.f32 %v2703, %v2735
      %v2768 = vmul.f32 %v2704, %v2736
      %v2769 = vmul.f32 %v2705, %v2737
      %v2770 = vmul.f32 %v2706, %v2738
      %v2771 = vmul.f32 %v2707, %v2739
      %v2772 = vmul.f32 %v2708, %v2740
      %v2773 = vmul.f32 %v2709, %v2741
      %v2774 = vmul.f32 %v2710, %v2742
      %v2775 = vmul.f32 %v2711, %v2743
      %v2776 = vmul.f32 %v2712, %v2744
      %v2777 = vmul.f32 %v2713, %v2745
      %v2778 = vmul.f32 %v2714, %v2746
      %v2779 = vmul.f32 %v2715, %v2747
      %v2780 = vmul.f32 %v2716, %v2748
      %v2781 = vmul.f32 %v2717, %v2749
      %v2782 = vmul.f32 %v2718, %v2750
      %v2783 = vmul.f32 %v2719, %v2751
      %v2784 = vmul.f32 %v2720, %v2752
      %v2785 = vmul.f32 %v2721, %v2753
      %v2786 = vmul.f32 %v2722, %v2754
      %v2787 = vmul.f32 %v2723, %v2755
      %v2788 = vmul.f32 %v2724, %v2756
      %v2789 = vmul.f32 %v2725, %v2757
      %v2790 = vmul.f32 %v2726, %v2758
      %v2791 = vmul.f32 %v2727, %v2759
      %v2792 = vmul.f32 %v2728, %v2760
      %v2793 = vmul.f32 %v2761, %v2199
      %v2794 = vmul.f32 %v2762, %v2214
      %v2795 = vmul.f32 %v2763, %v2229
      %v2796 = vmul.f32 %v2764, %v2244
      %v2797 = vmul.f32 %v2765, %v2259
      %v2798 = vmul.f32 %v2766, %v2274
      %v2799 = vmul.f32 %v2767, %v2289
      %v2800 = vmul.f32 %v2768, %v2304
      %v2801 = vmul.f32 %v2769, %v2319
      %v2802 = vmul.f32 %v2770, %v2334
      %v2803 = vmul.f32 %v2771, %v2349
      %v2804 = vmul.f32 %v2772, %v2364
      %v2805 = vmul.f32 %v2773, %v2379
      %v2806 = vmul.f32 %v2774, %v2394
      %v2807 = vmul.f32 %v2775, %v2409
      %v2808 = vmul.f32 %v2776, %v2424
      %v2809 = vmul.f32 %v2777, %v2439
      %v2810 = vmul.f32 %v2778, %v2454
      %v2811 = vmul.f32 %v2779, %v2469
      %v2812 = vmul.f32 %v2780, %v2484
      %v2813 = vmul.f32 %v2781, %v2499
      %v2814 = vmul.f32 %v2782, %v2514
      %v2815 = vmul.f32 %v2783, %v2529
      %v2816 = vmul.f32 %v2784, %v2544
      %v2817 = vmul.f32 %v2785, %v2559
      %v2818 = vmul.f32 %v2786, %v2574
      %v2819 = vmul.f32 %v2787, %v2589
      %v2820 = vmul.f32 %v2788, %v2604
      %v2821 = vmul.f32 %v2789, %v2619
      %v2822 = vmul.f32 %v2790, %v2634
      %v2823 = vmul.f32 %v2791, %v2649
      %v2824 = vmul.f32 %v2792, %v2664
      %v2825 = vmul.f32 %v1897, %v2199
      %v2826 = vmul.f32 %v1899, %v2214
      %v2827 = vmul.f32 %v1901, %v2229
      %v2828 = vmul.f32 %v1903, %v2244
      %v2829 = vmul.f32 %v1905, %v2259
      %v2830 = vmul.f32 %v1907, %v2274
      %v2831 = vmul.f32 %v1909, %v2289
      %v2832 = vmul.f32 %v1911, %v2304
      %v2833 = vmul.f32 %v1913, %v2319
      %v2834 = vmul.f32 %v1915, %v2334
      %v2835 = vmul.f32 %v1917, %v2349
      %v2836 = vmul.f32 %v1919, %v2364
      %v2837 = vmul.f32 %v1921, %v2379
      %v2838 = vmul.f32 %v1923, %v2394
      %v2839 = vmul.f32 %v1925, %v2409
      %v2840 = vmul.f32 %v1927, %v2424
      %v2841 = vmul.f32 %v1929, %v2439
      %v2842 = vmul.f32 %v1931, %v2454
      %v2843 = vmul.f32 %v1933, %v2469
      %v2844 = vmul.f32 %v1935, %v2484
      %v2845 = vmul.f32 %v1937, %v2499
      %v2846 = vmul.f32 %v1939, %v2514
      %v2847 = vmul.f32 %v1941, %v2529
      %v2848 = vmul.f32 %v1943, %v2544
      %v2849 = vmul.f32 %v1945, %v2559
      %v2850 = vmul.f32 %v1947, %v2574
      %v2851 = vmul.f32 %v1949, %v2589
      %v2852 = vmul.f32 %v1951, %v2604
      %v2853 = vmul.f32 %v1953, %v2619
      %v2854 = vmul.f32 %v1955, %v2634
      %v2855 = vmul.f32 %v1957, %v2649
      %v2856 = vmul.f32 %v1959, %v2664
      %v2857 = vsel %vm1831, %v2793, 0.0
      %v2858 = vsel %vm1831, %v2794, 0.0
      %v2859 = vsel %vm1831, %v2795, 0.0
      %v2860 = vsel %vm1831, %v2796, 0.0
      %v2861 = vsel %vm1831, %v2797, 0.0
      %v2862 = vsel %vm1831, %v2798, 0.0
      %v2863 = vsel %vm1831, %v2799, 0.0
      %v2864 = vsel %vm1831, %v2800, 0.0
      %v2865 = vsel %vm1831, %v2801, 0.0
      %v2866 = vsel %vm1831, %v2802, 0.0
      %v2867 = vsel %vm1831, %v2803, 0.0
      %v2868 = vsel %vm1831, %v2804, 0.0
      %v2869 = vsel %vm1831, %v2805, 0.0
      %v2870 = vsel %vm1831, %v2806, 0.0
      %v2871 = vsel %vm1831, %v2807, 0.0
      %v2872 = vsel %vm1831, %v2808, 0.0
      %v2873 = vsel %vm1831, %v2809, 0.0
      %v2874 = vsel %vm1831, %v2810, 0.0
      %v2875 = vsel %vm1831, %v2811, 0.0
      %v2876 = vsel %vm1831, %v2812, 0.0
      %v2877 = vsel %vm1831, %v2813, 0.0
      %v2878 = vsel %vm1831, %v2814, 0.0
      %v2879 = vsel %vm1831, %v2815, 0.0
      %v2880 = vsel %vm1831, %v2816, 0.0
      %v2881 = vsel %vm1831, %v2817, 0.0
      %v2882 = vsel %vm1831, %v2818, 0.0
      %v2883 = vsel %vm1831, %v2819, 0.0
      %v2884 = vsel %vm1831, %v2820, 0.0
      %v2885 = vsel %vm1831, %v2821, 0.0
      %v2886 = vsel %vm1831, %v2822, 0.0
      %v2887 = vsel %vm1831, %v2823, 0.0
      %v2888 = vsel %vm1831, %v2824, 0.0
      %v2889 = vsel %vm1637, %v2825, %v2857
      %v2890 = vsel %vm1637, %v2826, %v2858
      %v2891 = vsel %vm1637, %v2827, %v2859
      %v2892 = vsel %vm1637, %v2828, %v2860
      %v2893 = vsel %vm1637, %v2829, %v2861
      %v2894 = vsel %vm1637, %v2830, %v2862
      %v2895 = vsel %vm1637, %v2831, %v2863
      %v2896 = vsel %vm1637, %v2832, %v2864
      %v2897 = vsel %vm1637, %v2833, %v2865
      %v2898 = vsel %vm1637, %v2834, %v2866
      %v2899 = vsel %vm1637, %v2835, %v2867
      %v2900 = vsel %vm1637, %v2836, %v2868
      %v2901 = vsel %vm1637, %v2837, %v2869
      %v2902 = vsel %vm1637, %v2838, %v2870
      %v2903 = vsel %vm1637, %v2839, %v2871
      %v2904 = vsel %vm1637, %v2840, %v2872
      %v2905 = vsel %vm1637, %v2841, %v2873
      %v2906 = vsel %vm1637, %v2842, %v2874
      %v2907 = vsel %vm1637, %v2843, %v2875
      %v2908 = vsel %vm1637, %v2844, %v2876
      %v2909 = vsel %vm1637, %v2845, %v2877
      %v2910 = vsel %vm1637, %v2846, %v2878
      %v2911 = vsel %vm1637, %v2847, %v2879
      %v2912 = vsel %vm1637, %v2848, %v2880
      %v2913 = vsel %vm1637, %v2849, %v2881
      %v2914 = vsel %vm1637, %v2850, %v2882
      %v2915 = vsel %vm1637, %v2851, %v2883
      %v2916 = vsel %vm1637, %v2852, %v2884
      %v2917 = vsel %vm1637, %v2853, %v2885
      %v2918 = vsel %vm1637, %v2854, %v2886
      %v2919 = vsel %vm1637, %v2855, %v2887
      %v2920 = vsel %vm1637, %v2856, %v2888
      %v2921 = vpack.c.bf16 %v2889, %v2889
      %v2922 = vpack.c.bf16 %v2890, %v2890
      %v2923 = vpack.c.bf16 %v2891, %v2891
      %v2924 = vpack.c.bf16 %v2892, %v2892
      %v2925 = vpack.c.bf16 %v2893, %v2893
      %v2926 = vpack.c.bf16 %v2894, %v2894
      %v2927 = vpack.c.bf16 %v2895, %v2895
      %v2928 = vpack.c.bf16 %v2896, %v2896
      %v2929 = vpack.c.bf16 %v2897, %v2897
      %v2930 = vpack.c.bf16 %v2898, %v2898
      %v2931 = vpack.c.bf16 %v2899, %v2899
      %v2932 = vpack.c.bf16 %v2900, %v2900
      %v2933 = vpack.c.bf16 %v2901, %v2901
      %v2934 = vpack.c.bf16 %v2902, %v2902
      %v2935 = vpack.c.bf16 %v2903, %v2903
      %v2936 = vpack.c.bf16 %v2904, %v2904
      %v2937 = vpack.c.bf16 %v2905, %v2905
      %v2938 = vpack.c.bf16 %v2906, %v2906
      %v2939 = vpack.c.bf16 %v2907, %v2907
      %v2940 = vpack.c.bf16 %v2908, %v2908
      %v2941 = vpack.c.bf16 %v2909, %v2909
      %v2942 = vpack.c.bf16 %v2910, %v2910
      %v2943 = vpack.c.bf16 %v2911, %v2911
      %v2944 = vpack.c.bf16 %v2912, %v2912
      %v2945 = vpack.c.bf16 %v2913, %v2913
      %v2946 = vpack.c.bf16 %v2914, %v2914
      %v2947 = vpack.c.bf16 %v2915, %v2915
      %v2948 = vpack.c.bf16 %v2916, %v2916
      %v2949 = vpack.c.bf16 %v2917, %v2917
      %v2950 = vpack.c.bf16 %v2918, %v2918
      %v2951 = vpack.c.bf16 %v2919, %v2919
      %v2952 = vpack.c.bf16 %v2920, %v2920
      %2953 = vst [vmem:[%s307] sm:$0xf] %v2921
      %2954 = vst [vmem:[%s307 + $0x4] sm:$0xf] %v2922
      %2955 = vst [vmem:[%s307 + $0x8] sm:$0xf] %v2923
      %2956 = vst [vmem:[%s307 + $0xc] sm:$0xf] %v2924
      %2957 = vst [vmem:[%s307 + $0x10] sm:$0xf] %v2925
      %2958 = vst [vmem:[%s307 + $0x14] sm:$0xf] %v2926
      %2959 = vst [vmem:[%s307 + $0x18] sm:$0xf] %v2927
      %2960 = vst [vmem:[%s307 + $0x1c] sm:$0xf] %v2928
      %2961 = vst [vmem:[%s307 + $0x20] sm:$0xf] %v2929
      %2962 = vst [vmem:[%s307 + $0x24] sm:$0xf] %v2930
      %2963 = vst [vmem:[%s307 + $0x28] sm:$0xf] %v2931
      %2964 = vst [vmem:[%s307 + $0x2c] sm:$0xf] %v2932
      %2965 = vst [vmem:[%s307 + $0x30] sm:$0xf] %v2933
      %2966 = vst [vmem:[%s307 + $0x34] sm:$0xf] %v2934
      %2967 = vst [vmem:[%s307 + $0x38] sm:$0xf] %v2935
      %2968 = vst [vmem:[%s307 + $0x3c] sm:$0xf] %v2936
      %2969 = vst [vmem:[%s307 + $0x40] sm:$0xf] %v2937
      %2970 = vst [vmem:[%s307 + $0x44] sm:$0xf] %v2938
      %2971 = vst [vmem:[%s307 + $0x48] sm:$0xf] %v2939
      %2972 = vst [vmem:[%s307 + $0x4c] sm:$0xf] %v2940
      %2973 = vst [vmem:[%s307 + $0x50] sm:$0xf] %v2941
      %2974 = vst [vmem:[%s307 + $0x54] sm:$0xf] %v2942
      %2975 = vst [vmem:[%s307 + $0x58] sm:$0xf] %v2943
      %2976 = vst [vmem:[%s307 + $0x5c] sm:$0xf] %v2944
      %2977 = vst [vmem:[%s307 + $0x60] sm:$0xf] %v2945
      %2978 = vst [vmem:[%s307 + $0x64] sm:$0xf] %v2946
      %2979 = vst [vmem:[%s307 + $0x68] sm:$0xf] %v2947
      %2980 = vst [vmem:[%s307 + $0x6c] sm:$0xf] %v2948
      %2981 = vst [vmem:[%s307 + $0x70] sm:$0xf] %v2949
      %2982 = vst [vmem:[%s307 + $0x74] sm:$0xf] %v2950
      %2983 = vst [vmem:[%s307 + $0x78] sm:$0xf] %v2951
      %2984 = vst [vmem:[%s307 + $0x7c] sm:$0xf] %v2952
      %s2985 = smul.u32 32, %s19
      %p2986 = scmp.lt.s32.totalorder %s2985, 127
      %s2987 = scalar_select %p2986, %s2985, 127
      %s2988 = smul.addr %s2987, 4
      %s2989 = scalar_lea.vmem %s8, %s2988
      // Predicated region
      $region53: #{decoder_forward.1} parent=51 // pred_check
        %p2990 = pneg %p210
      $region54: #{decoder_forward.1} parent=51 // pred_check_branch
        %2992 = sbr.rel (%p2990) target = $region56
      $region55: #{decoder_forward.1} parent=51 // pred_region
        %s2993 = smul.u32 32, %s19
      $region56: #{decoder_forward.1} parent=51 // pred_fallthru
        _
    $region52: #{decoder_forward.1} parent=5 // pred_fallthru
      _
    %p2994 = scmp.le.s32.totalorder 2, %s14
    // Predicated region
    $region57: #{decoder_forward.1} parent=5 // pred_check
      %p2995 = pneg %p2994
    $region58: #{decoder_forward.1} parent=5 // pred_check_branch
      %2997 = sbr.rel (%p2995) target = $region60
    $region59: #{decoder_forward.1} parent=5 // pred_region
      %s2998 = ssub.s32 %s14, 2
      // Predicated region
      $region61: #{decoder_forward.1} parent=59 // pred_check
        %p2999 = pneg %p216
      $region62: #{decoder_forward.1} parent=59 // pred_check_branch
        %3001 = sbr.rel (%p2999) target = $region64
      $region63: #{decoder_forward.1} parent=59 // pred_region
        %s3002 = smul.u32 32, %s20
        %p3003 = scmp.lt.s32.totalorder %s3002, 127
        %s3004 = scalar_select %p3003, %s3002, 127
        %s3005 = smul.addr %s3004, 4
        %s3006 = scalar_lea.vmem %s8, %s3005
      $region64: #{decoder_forward.1} parent=59 // pred_fallthru
        _
    $region60: #{decoder_forward.1} parent=5 // pred_fallthru
      _
  $region6: #{decoder_forward.1} parent=0 // loop_footer
    %s18 = sadd.s32 1, %s14
  $region7: #{decoder_forward.1} parent=0 // loop_footer_branch
    %13 = sbr.rel target = $region3
  $region8: #{decoder_forward.1} parent=0 // loop_exit
    _

</llo_original>
